<compile_context>
chip_gen: v5e
topology: v5e:2x2
jax: 0.10.0
libtpu: 0.0.40
codegen_flags: <defaults>
</compile_context>

<pallas_src>
import functools

import jax
import jax.numpy as jnp
import numpy as np
from jax import lax
from jax.experimental import pallas as pl
from jax.experimental.pallas import tpu as pltpu


# ----------------------------------------------------------------------------
# Fused Pallas kernel: upsample -> concat -> conv1+BN+ReLU -> conv2+BN+ReLU
# ----------------------------------------------------------------------------
def fused_upsampling_kernel(x1_ref, x2_ref, u_ref, m_ref,
                            w1_ref, b1_ref, w2_ref, b2_ref, o_ref, *, W):
    # x1_ref: (1, C1, H1*W1)    low-res input, channels-first, spatial on lanes
    # x2_ref: (1, C2, H*W)      skip connection, spatial on lanes
    # u_ref:  (H1*W1, H*W)      bilinear x2 (align_corners=True) operator, bf16
    # m_ref:  (9, 1, H*W)       0/1 border masks per 3x3 tap (zero SAME padding)
    # w1_ref: (9, CmidP, Cin)   conv1 weights, tap-major, BN1 scale folded, bf16
    # b1_ref: (CmidP, 1)        folded BN1 bias, f32
    # w2_ref: (9, Cout, CmidP)  conv2 weights, tap-major, BN2 scale folded, bf16
    # b2_ref: (Cout, 1)         folded BN2 bias, f32
    # o_ref:  (1, Cout, H*W)    lane-dense output block
    f32 = jnp.float32
    bf16 = jnp.bfloat16
    hw = o_ref.shape[-1]

    x1 = x1_ref[0]                                   # (C1, H1*W1) f32
    x2 = x2_ref[0].astype(f32)                       # (C2, H*W)

    # Bilinear x2 upsample as ONE lane-dense bf16 matmul (no gathers).
    x1_up = jnp.dot(x1.astype(bf16), u_ref[...], preferred_element_type=f32)

    # Channel concat [x2, x1_up]  (== torch.cat([x2, x1], dim=1)).
    x_cat = jnp.concatenate([x2, x1_up], axis=0)     # (Cin, H*W) f32

    def conv3x3_bias_relu(x, w_ref_, b_ref_):
        # 3x3 SAME conv + folded-BN bias + ReLU on a (C, H*W) slab.
        # Per tap: lane rotate (XLU) + border mask (VPU) + small bf16 MXU
        # matmul, accumulated in f32.  No im2col tensor is materialized.
        co = w_ref_.shape[1]
        acc = jnp.zeros((co, hw), f32)
        for t in range(9):
            dy, dx = t // 3 - 1, t % 3 - 1
            shift = dy * W + dx                      # out[j] reads x[j + shift]
            if shift == 0:
                xs = x                               # center tap: no shift/mask
            else:
                xs = pltpu.roll(x, (-shift) % hw, axis=1)
                xs = xs * m_ref[t]                   # zero the SAME padding
            acc = acc + jnp.dot(w_ref_[t], xs.astype(bf16),
                                preferred_element_type=f32)
        return jnp.maximum(acc + b_ref_[...], 0.0)

    h = conv3x3_bias_relu(x_cat, w1_ref, b1_ref)     # (CmidP, H*W)
    y = conv3x3_bias_relu(h, w2_ref, b2_ref)         # (Cout, H*W)
    o_ref[0] = y.astype(o_ref.dtype)


# ----------------------------------------------------------------------------
# Host-side constant operators (built ONCE per spatial shape, cached)
# ----------------------------------------------------------------------------
@functools.lru_cache(maxsize=None)
def _bilinear_x2_operator(h, w):
    """U (h*w, 4*h*w) bf16 such that x(C,h*w) @ U == bilinear x2, align_corners=True."""
    oh, ow = 2 * h, 2 * w

    def interp(src, dst):
        if dst == 1:
            coords = np.zeros((1,), np.float64)
        else:
            coords = np.arange(dst, dtype=np.float64) * ((src - 1) / (dst - 1))
        m = np.zeros((dst, src), np.float32)
        c0 = np.floor(coords).astype(np.int64)
        c1 = np.minimum(c0 + 1, src - 1)
        f = (coords - c0).astype(np.float32)
        for o in range(dst):
            m[o, c0[o]] += 1.0 - f[o]
            m[o, c1[o]] += f[o]
        return m

    ty = interp(h, oh)                               # (oh, h)
    tx = interp(w, ow)                               # (ow, w)
    # U[h_*w + w_, O*ow + P] = ty[O, h_] * tx[P, w_]
    u = np.einsum("Oh,Pw->hwOP", ty, tx).reshape(h * w, oh * ow)
    return jnp.asarray(u, dtype=jnp.bfloat16)


@functools.lru_cache(maxsize=None)
def _conv3x3_border_masks(h, w):
    """(9, 1, h*w) f32 0/1 masks: zero the SAME-padding taps after a lane roll
    (also suppress cross-row / cross-image wraparound of the roll)."""
    masks = np.ones((9, 1, h * w), np.float32)
    ys, xs = np.meshgrid(np.arange(h), np.arange(w), indexing="ij")
    t = 0
    for dy in (-1, 0, 1):
        for dx in (-1, 0, 1):
            valid = ((ys + dy >= 0) & (ys + dy < h) &
                     (xs + dx >= 0) & (xs + dx < w))
            masks[t, 0] = valid.ravel().astype(np.float32)
            t += 1
    return jnp.asarray(masks)


# ----------------------------------------------------------------------------
# Parameter construction / BN folding
# ----------------------------------------------------------------------------
def fold_bn(gamma, beta, running_mean, running_var, eps=1e-5):
    scale = gamma / jnp.sqrt(running_var + eps)
    bias = beta - running_mean * scale
    return scale, bias


def fold_conv_bn_taps(w_hwio, scale, co_pad=None, ci_pad=None):
    """(3,3,Ci,Co) HWIO weight + per-Co BN scale -> (9, Co_pad, Ci_pad) bf16, tap-major."""
    ci, co = w_hwio.shape[2], w_hwio.shape[3]
    wt = jnp.transpose(w_hwio, (0, 1, 3, 2)).reshape(9, co, ci)    # [t, o, c]
    wt = wt * scale[None, :, None]
    co_pad = co_pad or co
    ci_pad = ci_pad or ci
    wt = jnp.pad(wt, ((0, 0), (0, co_pad - co), (0, ci_pad - ci)))
    return wt.astype(jnp.bfloat16)


def make_params(in_channels, out_channels, key):
    """Deterministic params mirroring Conv_block(in_ch, out_ch, in_ch//2), eval-mode BN."""
    mid = in_channels // 2
    mid_p = max(8, ((mid + 7) // 8) * 8)            # sublane-align hidden width
    k1, k2 = jax.random.split(key)
    # Weights rounded to bf16-representable f32 so the bf16-MXU Pallas path and
    # the f32 XLA reference share exactly the same parameter values.
    w1 = (0.1 * jax.random.normal(k1, (3, 3, in_channels, mid), jnp.float32)
          ).astype(jnp.bfloat16).astype(jnp.float32)
    w2 = (0.1 * jax.random.normal(k2, (3, 3, mid, out_channels), jnp.float32)
          ).astype(jnp.bfloat16).astype(jnp.float32)
    bn1 = (jnp.ones(mid), jnp.zeros(mid), jnp.zeros(mid), jnp.ones(mid))
    bn2 = (jnp.ones(out_channels), jnp.zeros(out_channels),
           jnp.zeros(out_channels), jnp.ones(out_channels))
    s1, b1 = fold_bn(*bn1)
    s2, b2 = fold_bn(*bn2)
    return dict(
        # raw params (XLA reference path)
        w1=w1, s1=s1, b1=b1, w2=w2, s2=s2, b2=b2,
        # folded / padded / bf16 params (fused Pallas kernel)
        w1f=fold_conv_bn_taps(w1, s1, co_pad=mid_p),               # (9, midP, Cin)
        b1col=jnp.pad(b1, (0, mid_p - mid)).reshape(mid_p, 1).astype(jnp.float32),
        w2f=fold_conv_bn_taps(w2, s2, ci_pad=mid_p),               # (9, Cout, midP)
        b2col=b2.reshape(out_channels, 1).astype(jnp.float32),
    )


# ----------------------------------------------------------------------------
# Public forward (NCHW in, NCHW out) — single fused pallas_call
# ----------------------------------------------------------------------------
def up_sampling_forward(x1_nchw, x2_nchw, params):
    n, c1, h1, w1 = x1_nchw.shape
    n2, c2, h, w = x2_nchw.shape
    assert n == n2 and h == 2 * h1 and w == 2 * w1
    hw, h1w1 = h * w, h1 * w1
    cin = c1 + c2
    cmid_p = params["w1f"].shape[1]
    cout = params["w2f"].shape[1]
    assert params["w1f"].shape[2] == cin

    # Free reshapes (row-major): NCHW -> (N, C, H*W), spatial flattened on lanes.
    x1_flat = x1_nchw.reshape(n, c1, h1w1)
    x2_flat = x2_nchw.reshape(n, c2, hw)

    # Constant operators: built/uploaded once per spatial shape (lru_cache).
    u = _bilinear_x2_operator(h1, w1)                # (H1*W1, H*W) bf16, ~32 KB
    masks = _conv3x3_border_masks(h, w)              # (9, 1, H*W)  f32,  ~9 KB

    flops = int(n * (2 * c1 * h1w1 * hw              # upsample matmul
                     + 9 * 2 * cmid_p * cin * hw     # conv1 (per-tap matmuls)
                     + 9 * 2 * cout * cmid_p * hw))  # conv2
    bytes_accessed = int(
        4 * (x1_flat.size + x2_flat.size + n * cout * hw
             + masks.size + cmid_p + cout)
        + 2 * (u.size + params["w1f"].size + params["w2f"].size))

    kernel = functools.partial(fused_upsampling_kernel, W=w)

    out_flat = pl.pallas_call(
        kernel,
        out_shape=jax.ShapeDtypeStruct((n, cout, hw), x1_nchw.dtype),
        grid=(n,),
        in_specs=[
            pl.BlockSpec((1, c1, h1w1), lambda i: (i, 0, 0)),
            pl.BlockSpec((1, c2, hw), lambda i: (i, 0, 0)),
            pl.BlockSpec((h1w1, hw), lambda i: (0, 0)),          # constants:
            pl.BlockSpec((9, 1, hw), lambda i: (0, 0, 0)),       # same block
            pl.BlockSpec((9, cmid_p, cin), lambda i: (0, 0, 0)), # every step
            pl.BlockSpec((cmid_p, 1), lambda i: (0, 0)),
            pl.BlockSpec((9, cout, cmid_p), lambda i: (0, 0, 0)),
            pl.BlockSpec((cout, 1), lambda i: (0, 0)),
        ],
        out_specs=pl.BlockSpec((1, cout, hw), lambda i: (i, 0, 0)),
        compiler_params=pltpu.CompilerParams(
            dimension_semantics=("parallel",)),      # N>=2 -> both v7x TCs busy
        cost_estimate=pl.CostEstimate(flops=flops, transcendentals=0,
                                      bytes_accessed=bytes_accessed),
    )(x1_flat, x2_flat, u, masks,
      params["w1f"], params["b1col"], params["w2f"], params["b2col"])

    return out_flat.reshape(n, cout, h, w)           # NCHW, free reshape


# ----------------------------------------------------------------------------
# Independent XLA reference (gather-based upsample + lax.conv) for checking
# ----------------------------------------------------------------------------
def bilinear_upsample_x2_align_corners_ref(x_nhwc):
    N, H, W, C = x_nhwc.shape
    OH, OW = 2 * H, 2 * W
    ys = jnp.arange(OH, dtype=jnp.float32) * ((H - 1) / (OH - 1))
    xs = jnp.arange(OW, dtype=jnp.float32) * ((W - 1) / (OW - 1))
    y0 = jnp.floor(ys).astype(jnp.int32)
    x0 = jnp.floor(xs).astype(jnp.int32)
    y1 = jnp.minimum(y0 + 1, H - 1)
    x1 = jnp.minimum(x0 + 1, W - 1)
    wy = (ys - y0.astype(jnp.float32))[None, :, None, None]
    wx = (xs - x0.astype(jnp.float32))[None, None, :, None]

    def gather(yi, xi):
        return x_nhwc[:, yi][:, :, xi]

    top = gather(y0, x0) * (1.0 - wx) + gather(y0, x1) * wx
    bot = gather(y1, x0) * (1.0 - wx) + gather(y1, x1) * wx
    return top * (1.0 - wy) + bot * wy


def conv_bn_relu_ref(x_nhwc, w_hwio, scale, bias):
    y = lax.conv_general_dilated(
        x_nhwc, w_hwio, window_strides=(1, 1), padding="SAME",
        dimension_numbers=("NHWC", "HWIO", "NHWC"))
    return jnp.maximum(y * scale + bias, 0.0)


def up_sampling_reference(x1_nchw, x2_nchw, params):
    x1 = jnp.transpose(x1_nchw, (0, 2, 3, 1))
    x2 = jnp.transpose(x2_nchw, (0, 2, 3, 1))
    x1_up = bilinear_upsample_x2_align_corners_ref(x1)
    x = jnp.concatenate([x2, x1_up], axis=-1)
    h = conv_bn_relu_ref(x, params["w1"], params["s1"], params["b1"])
    y = conv_bn_relu_ref(h, params["w2"], params["s2"], params["b2"])
    return jnp.transpose(y, (0, 3, 1, 2))


if __name__ == "__main__":
    key = jax.random.PRNGKey(0)
    k_x1, k_x2, k_p = jax.random.split(key, 3)

    # Up_sampling(in_channels=8, out_channels=8): x1 has 4 ch at 8x8,
    # x2 has 4 ch at 16x16 (so the concat has in_channels=8).
    N, C1, H1, W1 = 2, 4, 8, 8
    C2 = 4
    # Inputs rounded to bf16-representable f32 so the bf16-MXU kernel path and
    # the f32 XLA reference differ only by tiny rounding of intermediates.
    x1 = jax.random.normal(k_x1, (N, C1, H1, W1), jnp.float32
                           ).astype(jnp.bfloat16).astype(jnp.float32)
    x2 = jax.random.normal(k_x2, (N, C2, 2 * H1, 2 * W1), jnp.float32
                           ).astype(jnp.bfloat16).astype(jnp.float32)

    in_channels = C1 + C2
    out_channels = 8
    params = make_params(in_channels, out_channels, k_p)

    out = up_sampling_forward(x1, x2, params)
    out = jax.block_until_ready(out)
    assert out.shape == (N, out_channels, 2 * H1, 2 * W1)

    # Cross-check the fused Pallas kernel against an independent XLA reference.
    # Tolerance sized for the bf16 MXU operands on the Pallas path vs the f32
    # XLA path; real bugs (wrong tap/shift/mask/concat order) give O(0.1-1)
    # errors and are caught easily.
    ref = jax.block_until_ready(up_sampling_reference(x1, x2, params))
    np.testing.assert_allclose(np.asarray(out), np.asarray(ref),
                               rtol=2e-2, atol=2e-2)

    # TODO(synk): BatchNorm is folded in eval mode; training-mode batch-stat
    # updates are not implemented in the kernel.
    print("KERNEL_OK")
</pallas_src>

<mosaic_0001>
module attributes {stable_mosaic.version = 11 : i64} {
  func.func @fused_upsampling_kernel(%arg0: i32, %arg1: memref<1x4x64xf32, #tpu.memory_space<vmem>>, %arg2: memref<1x4x256xf32, #tpu.memory_space<vmem>>, %arg3: memref<64x256xbf16, #tpu.memory_space<vmem>>, %arg4: memref<9x1x256xf32, #tpu.memory_space<vmem>>, %arg5: memref<9x8x8xbf16, #tpu.memory_space<vmem>>, %arg6: memref<8x1xf32, #tpu.memory_space<vmem>>, %arg7: memref<9x8x8xbf16, #tpu.memory_space<vmem>>, %arg8: memref<8x1xf32, #tpu.memory_space<vmem>>, %arg9: memref<1x8x256xf32, #tpu.memory_space<vmem>>) attributes {dimension_semantics = [#tpu.dimension_semantics<parallel>], iteration_bounds = array<i64: 2>, scalar_prefetch = 0 : i64, scratch_operands = 0 : i64, tpu.core_type = #tpu.core_type<tc>, window_params = [{transform_indices = @transform_0, window_bounds = array<i64: 1, 4, 64>}, {transform_indices = @transform_1, window_bounds = array<i64: 1, 4, 256>}, {pipeline_mode = #tpu.pipeline_mode<synchronous>, transform_indices = @transform_2, window_bounds = array<i64: 64, 256>}, {pipeline_mode = #tpu.pipeline_mode<synchronous>, transform_indices = @transform_3, window_bounds = array<i64: 9, 1, 256>}, {pipeline_mode = #tpu.pipeline_mode<synchronous>, transform_indices = @transform_4, window_bounds = array<i64: 9, 8, 8>}, {pipeline_mode = #tpu.pipeline_mode<synchronous>, transform_indices = @transform_5, window_bounds = array<i64: 8, 1>}, {pipeline_mode = #tpu.pipeline_mode<synchronous>, transform_indices = @transform_6, window_bounds = array<i64: 9, 8, 8>}, {pipeline_mode = #tpu.pipeline_mode<synchronous>, transform_indices = @transform_7, window_bounds = array<i64: 8, 1>}, {transform_indices = @transform_8, window_bounds = array<i64: 1, 8, 256>}]} {
    %c0 = arith.constant 0 : index
    %c0_0 = arith.constant 0 : index
    %c0_1 = arith.constant 0 : index
    %0 = vector.load %arg1[%c0, %c0_0, %c0_1] : memref<1x4x64xf32, #tpu.memory_space<vmem>>, vector<1x4x64xf32>
    %1 = vector.shape_cast %0 : vector<1x4x64xf32> to vector<4x64xf32>
    %c0_2 = arith.constant 0 : index
    %c0_3 = arith.constant 0 : index
    %c0_4 = arith.constant 0 : index
    %2 = vector.load %arg2[%c0_2, %c0_3, %c0_4] : memref<1x4x256xf32, #tpu.memory_space<vmem>>, vector<1x4x256xf32>
    %3 = vector.shape_cast %2 : vector<1x4x256xf32> to vector<4x256xf32>
    %4 = arith.truncf %1 : vector<4x64xf32> to vector<4x64xbf16>
    %c0_5 = arith.constant 0 : index
    %c0_6 = arith.constant 0 : index
    %5 = vector.load %arg3[%c0_5, %c0_6] : memref<64x256xbf16, #tpu.memory_space<vmem>>, vector<64x256xbf16>
    %cst = arith.constant dense<0.000000e+00> : vector<4x256xf32>
    %6 = tpu.matmul %4, %5, %cst {dimension_numbers = #tpu.dot_dimension_numbers<[1], [0], [0], [1], [0, 0, 1, 1], [], []>} : vector<4x64xbf16>, vector<64x256xbf16>, vector<4x256xf32> -> vector<4x256xf32>
    %7 = tpu.concatenate %3, %6 in 0 : vector<4x256xf32>, vector<4x256xf32> -> vector<8x256xf32>
    %cst_7 = arith.constant 0.000000e+00 : f32
    %8 = vector.broadcast %cst_7 : f32 to vector<8x256xf32>
    %c17_i32 = arith.constant 17 : i32
    %9 = tpu.dynamic_rotate %7 by %c17_i32 dim 1 : vector<8x256xf32>, i32 -> vector<8x256xf32>
    %c0_8 = arith.constant 0 : index
    %c0_9 = arith.constant 0 : index
    %c0_10 = arith.constant 0 : index
    %10 = vector.load %arg4[%c0_8, %c0_9, %c0_10] : memref<9x1x256xf32, #tpu.memory_space<vmem>>, vector<1x1x256xf32>
    %11 = vector.shape_cast %10 : vector<1x1x256xf32> to vector<1x256xf32>
    %12 = vector.broadcast %11 : vector<1x256xf32> to vector<8x256xf32>
    %13 = arith.mulf %9, %12 : vector<8x256xf32>
    %c0_11 = arith.constant 0 : index
    %c0_12 = arith.constant 0 : index
    %c0_13 = arith.constant 0 : index
    %14 = vector.load %arg5[%c0_11, %c0_12, %c0_13] : memref<9x8x8xbf16, #tpu.memory_space<vmem>>, vector<1x8x8xbf16>
    %15 = vector.shape_cast %14 : vector<1x8x8xbf16> to vector<8x8xbf16>
    %16 = arith.truncf %13 : vector<8x256xf32> to vector<8x256xbf16>
    %cst_14 = arith.constant dense<0.000000e+00> : vector<8x256xf32>
    %17 = tpu.matmul %15, %16, %cst_14 {dimension_numbers = #tpu.dot_dimension_numbers<[1], [0], [0], [1], [0, 0, 1, 1], [], []>} : vector<8x8xbf16>, vector<8x256xbf16>, vector<8x256xf32> -> vector<8x256xf32>
    %18 = arith.addf %8, %17 : vector<8x256xf32>
    %c16_i32 = arith.constant 16 : i32
    %19 = tpu.dynamic_rotate %7 by %c16_i32 dim 1 : vector<8x256xf32>, i32 -> vector<8x256xf32>
    %c1 = arith.constant 1 : index
    %c0_15 = arith.constant 0 : index
    %c0_16 = arith.constant 0 : index
    %20 = vector.load %arg4[%c1, %c0_15, %c0_16] : memref<9x1x256xf32, #tpu.memory_space<vmem>>, vector<1x1x256xf32>
    %21 = vector.shape_cast %20 : vector<1x1x256xf32> to vector<1x256xf32>
    %22 = vector.broadcast %21 : vector<1x256xf32> to vector<8x256xf32>
    %23 = arith.mulf %19, %22 : vector<8x256xf32>
    %c1_17 = arith.constant 1 : index
    %c0_18 = arith.constant 0 : index
    %c0_19 = arith.constant 0 : index
    %24 = vector.load %arg5[%c1_17, %c0_18, %c0_19] : memref<9x8x8xbf16, #tpu.memory_space<vmem>>, vector<1x8x8xbf16>
    %25 = vector.shape_cast %24 : vector<1x8x8xbf16> to vector<8x8xbf16>
    %26 = arith.truncf %23 : vector<8x256xf32> to vector<8x256xbf16>
    %cst_20 = arith.constant dense<0.000000e+00> : vector<8x256xf32>
    %27 = tpu.matmul %25, %26, %cst_20 {dimension_numbers = #tpu.dot_dimension_numbers<[1], [0], [0], [1], [0, 0, 1, 1], [], []>} : vector<8x8xbf16>, vector<8x256xbf16>, vector<8x256xf32> -> vector<8x256xf32>
    %28 = arith.addf %18, %27 : vector<8x256xf32>
    %c15_i32 = arith.constant 15 : i32
    %29 = tpu.dynamic_rotate %7 by %c15_i32 dim 1 : vector<8x256xf32>, i32 -> vector<8x256xf32>
    %c2 = arith.constant 2 : index
    %c0_21 = arith.constant 0 : index
    %c0_22 = arith.constant 0 : index
    %30 = vector.load %arg4[%c2, %c0_21, %c0_22] : memref<9x1x256xf32, #tpu.memory_space<vmem>>, vector<1x1x256xf32>
    %31 = vector.shape_cast %30 : vector<1x1x256xf32> to vector<1x256xf32>
    %32 = vector.broadcast %31 : vector<1x256xf32> to vector<8x256xf32>
    %33 = arith.mulf %29, %32 : vector<8x256xf32>
    %c2_23 = arith.constant 2 : index
    %c0_24 = arith.constant 0 : index
    %c0_25 = arith.constant 0 : index
    %34 = vector.load %arg5[%c2_23, %c0_24, %c0_25] : memref<9x8x8xbf16, #tpu.memory_space<vmem>>, vector<1x8x8xbf16>
    %35 = vector.shape_cast %34 : vector<1x8x8xbf16> to vector<8x8xbf16>
    %36 = arith.truncf %33 : vector<8x256xf32> to vector<8x256xbf16>
    %cst_26 = arith.constant dense<0.000000e+00> : vector<8x256xf32>
    %37 = tpu.matmul %35, %36, %cst_26 {dimension_numbers = #tpu.dot_dimension_numbers<[1], [0], [0], [1], [0, 0, 1, 1], [], []>} : vector<8x8xbf16>, vector<8x256xbf16>, vector<8x256xf32> -> vector<8x256xf32>
    %38 = arith.addf %28, %37 : vector<8x256xf32>
    %c1_i32 = arith.constant 1 : i32
    %39 = tpu.dynamic_rotate %7 by %c1_i32 dim 1 : vector<8x256xf32>, i32 -> vector<8x256xf32>
    %c3 = arith.constant 3 : index
    %c0_27 = arith.constant 0 : index
    %c0_28 = arith.constant 0 : index
    %40 = vector.load %arg4[%c3, %c0_27, %c0_28] : memref<9x1x256xf32, #tpu.memory_space<vmem>>, vector<1x1x256xf32>
    %41 = vector.shape_cast %40 : vector<1x1x256xf32> to vector<1x256xf32>
    %42 = vector.broadcast %41 : vector<1x256xf32> to vector<8x256xf32>
    %43 = arith.mulf %39, %42 : vector<8x256xf32>
    %c3_29 = arith.constant 3 : index
    %c0_30 = arith.constant 0 : index
    %c0_31 = arith.constant 0 : index
    %44 = vector.load %arg5[%c3_29, %c0_30, %c0_31] : memref<9x8x8xbf16, #tpu.memory_space<vmem>>, vector<1x8x8xbf16>
    %45 = vector.shape_cast %44 : vector<1x8x8xbf16> to vector<8x8xbf16>
    %46 = arith.truncf %43 : vector<8x256xf32> to vector<8x256xbf16>
    %cst_32 = arith.constant dense<0.000000e+00> : vector<8x256xf32>
    %47 = tpu.matmul %45, %46, %cst_32 {dimension_numbers = #tpu.dot_dimension_numbers<[1], [0], [0], [1], [0, 0, 1, 1], [], []>} : vector<8x8xbf16>, vector<8x256xbf16>, vector<8x256xf32> -> vector<8x256xf32>
    %48 = arith.addf %38, %47 : vector<8x256xf32>
    %c4 = arith.constant 4 : index
    %c0_33 = arith.constant 0 : index
    %c0_34 = arith.constant 0 : index
    %49 = vector.load %arg5[%c4, %c0_33, %c0_34] : memref<9x8x8xbf16, #tpu.memory_space<vmem>>, vector<1x8x8xbf16>
    %50 = vector.shape_cast %49 : vector<1x8x8xbf16> to vector<8x8xbf16>
    %51 = arith.truncf %7 : vector<8x256xf32> to vector<8x256xbf16>
    %cst_35 = arith.constant dense<0.000000e+00> : vector<8x256xf32>
    %52 = tpu.matmul %50, %51, %cst_35 {dimension_numbers = #tpu.dot_dimension_numbers<[1], [0], [0], [1], [0, 0, 1, 1], [], []>} : vector<8x8xbf16>, vector<8x256xbf16>, vector<8x256xf32> -> vector<8x256xf32>
    %53 = arith.addf %48, %52 : vector<8x256xf32>
    %c255_i32 = arith.constant 255 : i32
    %54 = tpu.dynamic_rotate %7 by %c255_i32 dim 1 : vector<8x256xf32>, i32 -> vector<8x256xf32>
    %c5 = arith.constant 5 : index
    %c0_36 = arith.constant 0 : index
    %c0_37 = arith.constant 0 : index
    %55 = vector.load %arg4[%c5, %c0_36, %c0_37] : memref<9x1x256xf32, #tpu.memory_space<vmem>>, vector<1x1x256xf32>
    %56 = vector.shape_cast %55 : vector<1x1x256xf32> to vector<1x256xf32>
    %57 = vector.broadcast %56 : vector<1x256xf32> to vector<8x256xf32>
    %58 = arith.mulf %54, %57 : vector<8x256xf32>
    %c5_38 = arith.constant 5 : index
    %c0_39 = arith.constant 0 : index
    %c0_40 = arith.constant 0 : index
    %59 = vector.load %arg5[%c5_38, %c0_39, %c0_40] : memref<9x8x8xbf16, #tpu.memory_space<vmem>>, vector<1x8x8xbf16>
    %60 = vector.shape_cast %59 : vector<1x8x8xbf16> to vector<8x8xbf16>
    %61 = arith.truncf %58 : vector<8x256xf32> to vector<8x256xbf16>
    %cst_41 = arith.constant dense<0.000000e+00> : vector<8x256xf32>
    %62 = tpu.matmul %60, %61, %cst_41 {dimension_numbers = #tpu.dot_dimension_numbers<[1], [0], [0], [1], [0, 0, 1, 1], [], []>} : vector<8x8xbf16>, vector<8x256xbf16>, vector<8x256xf32> -> vector<8x256xf32>
    %63 = arith.addf %53, %62 : vector<8x256xf32>
    %c241_i32 = arith.constant 241 : i32
    %64 = tpu.dynamic_rotate %7 by %c241_i32 dim 1 : vector<8x256xf32>, i32 -> vector<8x256xf32>
    %c6 = arith.constant 6 : index
    %c0_42 = arith.constant 0 : index
    %c0_43 = arith.constant 0 : index
    %65 = vector.load %arg4[%c6, %c0_42, %c0_43] : memref<9x1x256xf32, #tpu.memory_space<vmem>>, vector<1x1x256xf32>
    %66 = vector.shape_cast %65 : vector<1x1x256xf32> to vector<1x256xf32>
    %67 = vector.broadcast %66 : vector<1x256xf32> to vector<8x256xf32>
    %68 = arith.mulf %64, %67 : vector<8x256xf32>
    %c6_44 = arith.constant 6 : index
    %c0_45 = arith.constant 0 : index
    %c0_46 = arith.constant 0 : index
    %69 = vector.load %arg5[%c6_44, %c0_45, %c0_46] : memref<9x8x8xbf16, #tpu.memory_space<vmem>>, vector<1x8x8xbf16>
    %70 = vector.shape_cast %69 : vector<1x8x8xbf16> to vector<8x8xbf16>
    %71 = arith.truncf %68 : vector<8x256xf32> to vector<8x256xbf16>
    %cst_47 = arith.constant dense<0.000000e+00> : vector<8x256xf32>
    %72 = tpu.matmul %70, %71, %cst_47 {dimension_numbers = #tpu.dot_dimension_numbers<[1], [0], [0], [1], [0, 0, 1, 1], [], []>} : vector<8x8xbf16>, vector<8x256xbf16>, vector<8x256xf32> -> vector<8x256xf32>
    %73 = arith.addf %63, %72 : vector<8x256xf32>
    %c240_i32 = arith.constant 240 : i32
    %74 = tpu.dynamic_rotate %7 by %c240_i32 dim 1 : vector<8x256xf32>, i32 -> vector<8x256xf32>
    %c7 = arith.constant 7 : index
    %c0_48 = arith.constant 0 : index
    %c0_49 = arith.constant 0 : index
    %75 = vector.load %arg4[%c7, %c0_48, %c0_49] : memref<9x1x256xf32, #tpu.memory_space<vmem>>, vector<1x1x256xf32>
    %76 = vector.shape_cast %75 : vector<1x1x256xf32> to vector<1x256xf32>
    %77 = vector.broadcast %76 : vector<1x256xf32> to vector<8x256xf32>
    %78 = arith.mulf %74, %77 : vector<8x256xf32>
    %c7_50 = arith.constant 7 : index
    %c0_51 = arith.constant 0 : index
    %c0_52 = arith.constant 0 : index
    %79 = vector.load %arg5[%c7_50, %c0_51, %c0_52] : memref<9x8x8xbf16, #tpu.memory_space<vmem>>, vector<1x8x8xbf16>
    %80 = vector.shape_cast %79 : vector<1x8x8xbf16> to vector<8x8xbf16>
    %81 = arith.truncf %78 : vector<8x256xf32> to vector<8x256xbf16>
    %cst_53 = arith.constant dense<0.000000e+00> : vector<8x256xf32>
    %82 = tpu.matmul %80, %81, %cst_53 {dimension_numbers = #tpu.dot_dimension_numbers<[1], [0], [0], [1], [0, 0, 1, 1], [], []>} : vector<8x8xbf16>, vector<8x256xbf16>, vector<8x256xf32> -> vector<8x256xf32>
    %83 = arith.addf %73, %82 : vector<8x256xf32>
    %c239_i32 = arith.constant 239 : i32
    %84 = tpu.dynamic_rotate %7 by %c239_i32 dim 1 : vector<8x256xf32>, i32 -> vector<8x256xf32>
    %c8 = arith.constant 8 : index
    %c0_54 = arith.constant 0 : index
    %c0_55 = arith.constant 0 : index
    %85 = vector.load %arg4[%c8, %c0_54, %c0_55] : memref<9x1x256xf32, #tpu.memory_space<vmem>>, vector<1x1x256xf32>
    %86 = vector.shape_cast %85 : vector<1x1x256xf32> to vector<1x256xf32>
    %87 = vector.broadcast %86 : vector<1x256xf32> to vector<8x256xf32>
    %88 = arith.mulf %84, %87 : vector<8x256xf32>
    %c8_56 = arith.constant 8 : index
    %c0_57 = arith.constant 0 : index
    %c0_58 = arith.constant 0 : index
    %89 = vector.load %arg5[%c8_56, %c0_57, %c0_58] : memref<9x8x8xbf16, #tpu.memory_space<vmem>>, vector<1x8x8xbf16>
    %90 = vector.shape_cast %89 : vector<1x8x8xbf16> to vector<8x8xbf16>
    %91 = arith.truncf %88 : vector<8x256xf32> to vector<8x256xbf16>
    %cst_59 = arith.constant dense<0.000000e+00> : vector<8x256xf32>
    %92 = tpu.matmul %90, %91, %cst_59 {dimension_numbers = #tpu.dot_dimension_numbers<[1], [0], [0], [1], [0, 0, 1, 1], [], []>} : vector<8x8xbf16>, vector<8x256xbf16>, vector<8x256xf32> -> vector<8x256xf32>
    %93 = arith.addf %83, %92 : vector<8x256xf32>
    %c0_60 = arith.constant 0 : index
    %c0_61 = arith.constant 0 : index
    %94 = vector.load %arg6[%c0_60, %c0_61] : memref<8x1xf32, #tpu.memory_space<vmem>>, vector<8x1xf32>
    %95 = vector.broadcast %94 : vector<8x1xf32> to vector<8x256xf32>
    %96 = arith.addf %93, %95 : vector<8x256xf32>
    %cst_62 = arith.constant 0.000000e+00 : f32
    %97 = vector.broadcast %cst_62 : f32 to vector<8x256xf32>
    %98 = arith.maximumf %96, %97 : vector<8x256xf32>
    %cst_63 = arith.constant 0.000000e+00 : f32
    %99 = vector.broadcast %cst_63 : f32 to vector<8x256xf32>
    %c17_i32_64 = arith.constant 17 : i32
    %100 = tpu.dynamic_rotate %98 by %c17_i32_64 dim 1 : vector<8x256xf32>, i32 -> vector<8x256xf32>
    %c0_65 = arith.constant 0 : index
    %c0_66 = arith.constant 0 : index
    %c0_67 = arith.constant 0 : index
    %101 = vector.load %arg4[%c0_65, %c0_66, %c0_67] : memref<9x1x256xf32, #tpu.memory_space<vmem>>, vector<1x1x256xf32>
    %102 = vector.shape_cast %101 : vector<1x1x256xf32> to vector<1x256xf32>
    %103 = vector.broadcast %102 : vector<1x256xf32> to vector<8x256xf32>
    %104 = arith.mulf %100, %103 : vector<8x256xf32>
    %c0_68 = arith.constant 0 : index
    %c0_69 = arith.constant 0 : index
    %c0_70 = arith.constant 0 : index
    %105 = vector.load %arg7[%c0_68, %c0_69, %c0_70] : memref<9x8x8xbf16, #tpu.memory_space<vmem>>, vector<1x8x8xbf16>
    %106 = vector.shape_cast %105 : vector<1x8x8xbf16> to vector<8x8xbf16>
    %107 = arith.truncf %104 : vector<8x256xf32> to vector<8x256xbf16>
    %cst_71 = arith.constant dense<0.000000e+00> : vector<8x256xf32>
    %108 = tpu.matmul %106, %107, %cst_71 {dimension_numbers = #tpu.dot_dimension_numbers<[1], [0], [0], [1], [0, 0, 1, 1], [], []>} : vector<8x8xbf16>, vector<8x256xbf16>, vector<8x256xf32> -> vector<8x256xf32>
    %109 = arith.addf %99, %108 : vector<8x256xf32>
    %c16_i32_72 = arith.constant 16 : i32
    %110 = tpu.dynamic_rotate %98 by %c16_i32_72 dim 1 : vector<8x256xf32>, i32 -> vector<8x256xf32>
    %c1_73 = arith.constant 1 : index
    %c0_74 = arith.constant 0 : index
    %c0_75 = arith.constant 0 : index
    %111 = vector.load %arg4[%c1_73, %c0_74, %c0_75] : memref<9x1x256xf32, #tpu.memory_space<vmem>>, vector<1x1x256xf32>
    %112 = vector.shape_cast %111 : vector<1x1x256xf32> to vector<1x256xf32>
    %113 = vector.broadcast %112 : vector<1x256xf32> to vector<8x256xf32>
    %114 = arith.mulf %110, %113 : vector<8x256xf32>
    %c1_76 = arith.constant 1 : index
    %c0_77 = arith.constant 0 : index
    %c0_78 = arith.constant 0 : index
    %115 = vector.load %arg7[%c1_76, %c0_77, %c0_78] : memref<9x8x8xbf16, #tpu.memory_space<vmem>>, vector<1x8x8xbf16>
    %116 = vector.shape_cast %115 : vector<1x8x8xbf16> to vector<8x8xbf16>
    %117 = arith.truncf %114 : vector<8x256xf32> to vector<8x256xbf16>
    %cst_79 = arith.constant dense<0.000000e+00> : vector<8x256xf32>
    %118 = tpu.matmul %116, %117, %cst_79 {dimension_numbers = #tpu.dot_dimension_numbers<[1], [0], [0], [1], [0, 0, 1, 1], [], []>} : vector<8x8xbf16>, vector<8x256xbf16>, vector<8x256xf32> -> vector<8x256xf32>
    %119 = arith.addf %109, %118 : vector<8x256xf32>
    %c15_i32_80 = arith.constant 15 : i32
    %120 = tpu.dynamic_rotate %98 by %c15_i32_80 dim 1 : vector<8x256xf32>, i32 -> vector<8x256xf32>
    %c2_81 = arith.constant 2 : index
    %c0_82 = arith.constant 0 : index
    %c0_83 = arith.constant 0 : index
    %121 = vector.load %arg4[%c2_81, %c0_82, %c0_83] : memref<9x1x256xf32, #tpu.memory_space<vmem>>, vector<1x1x256xf32>
    %122 = vector.shape_cast %121 : vector<1x1x256xf32> to vector<1x256xf32>
    %123 = vector.broadcast %122 : vector<1x256xf32> to vector<8x256xf32>
    %124 = arith.mulf %120, %123 : vector<8x256xf32>
    %c2_84 = arith.constant 2 : index
    %c0_85 = arith.constant 0 : index
    %c0_86 = arith.constant 0 : index
    %125 = vector.load %arg7[%c2_84, %c0_85, %c0_86] : memref<9x8x8xbf16, #tpu.memory_space<vmem>>, vector<1x8x8xbf16>
    %126 = vector.shape_cast %125 : vector<1x8x8xbf16> to vector<8x8xbf16>
    %127 = arith.truncf %124 : vector<8x256xf32> to vector<8x256xbf16>
    %cst_87 = arith.constant dense<0.000000e+00> : vector<8x256xf32>
    %128 = tpu.matmul %126, %127, %cst_87 {dimension_numbers = #tpu.dot_dimension_numbers<[1], [0], [0], [1], [0, 0, 1, 1], [], []>} : vector<8x8xbf16>, vector<8x256xbf16>, vector<8x256xf32> -> vector<8x256xf32>
    %129 = arith.addf %119, %128 : vector<8x256xf32>
    %c1_i32_88 = arith.constant 1 : i32
    %130 = tpu.dynamic_rotate %98 by %c1_i32_88 dim 1 : vector<8x256xf32>, i32 -> vector<8x256xf32>
    %c3_89 = arith.constant 3 : index
    %c0_90 = arith.constant 0 : index
    %c0_91 = arith.constant 0 : index
    %131 = vector.load %arg4[%c3_89, %c0_90, %c0_91] : memref<9x1x256xf32, #tpu.memory_space<vmem>>, vector<1x1x256xf32>
    %132 = vector.shape_cast %131 : vector<1x1x256xf32> to vector<1x256xf32>
    %133 = vector.broadcast %132 : vector<1x256xf32> to vector<8x256xf32>
    %134 = arith.mulf %130, %133 : vector<8x256xf32>
    %c3_92 = arith.constant 3 : index
    %c0_93 = arith.constant 0 : index
    %c0_94 = arith.constant 0 : index
    %135 = vector.load %arg7[%c3_92, %c0_93, %c0_94] : memref<9x8x8xbf16, #tpu.memory_space<vmem>>, vector<1x8x8xbf16>
    %136 = vector.shape_cast %135 : vector<1x8x8xbf16> to vector<8x8xbf16>
    %137 = arith.truncf %134 : vector<8x256xf32> to vector<8x256xbf16>
    %cst_95 = arith.constant dense<0.000000e+00> : vector<8x256xf32>
    %138 = tpu.matmul %136, %137, %cst_95 {dimension_numbers = #tpu.dot_dimension_numbers<[1], [0], [0], [1], [0, 0, 1, 1], [], []>} : vector<8x8xbf16>, vector<8x256xbf16>, vector<8x256xf32> -> vector<8x256xf32>
    %139 = arith.addf %129, %138 : vector<8x256xf32>
    %c4_96 = arith.constant 4 : index
    %c0_97 = arith.constant 0 : index
    %c0_98 = arith.constant 0 : index
    %140 = vector.load %arg7[%c4_96, %c0_97, %c0_98] : memref<9x8x8xbf16, #tpu.memory_space<vmem>>, vector<1x8x8xbf16>
    %141 = vector.shape_cast %140 : vector<1x8x8xbf16> to vector<8x8xbf16>
    %142 = arith.truncf %98 : vector<8x256xf32> to vector<8x256xbf16>
    %cst_99 = arith.constant dense<0.000000e+00> : vector<8x256xf32>
    %143 = tpu.matmul %141, %142, %cst_99 {dimension_numbers = #tpu.dot_dimension_numbers<[1], [0], [0], [1], [0, 0, 1, 1], [], []>} : vector<8x8xbf16>, vector<8x256xbf16>, vector<8x256xf32> -> vector<8x256xf32>
    %144 = arith.addf %139, %143 : vector<8x256xf32>
    %c255_i32_100 = arith.constant 255 : i32
    %145 = tpu.dynamic_rotate %98 by %c255_i32_100 dim 1 : vector<8x256xf32>, i32 -> vector<8x256xf32>
    %c5_101 = arith.constant 5 : index
    %c0_102 = arith.constant 0 : index
    %c0_103 = arith.constant 0 : index
    %146 = vector.load %arg4[%c5_101, %c0_102, %c0_103] : memref<9x1x256xf32, #tpu.memory_space<vmem>>, vector<1x1x256xf32>
    %147 = vector.shape_cast %146 : vector<1x1x256xf32> to vector<1x256xf32>
    %148 = vector.broadcast %147 : vector<1x256xf32> to vector<8x256xf32>
    %149 = arith.mulf %145, %148 : vector<8x256xf32>
    %c5_104 = arith.constant 5 : index
    %c0_105 = arith.constant 0 : index
    %c0_106 = arith.constant 0 : index
    %150 = vector.load %arg7[%c5_104, %c0_105, %c0_106] : memref<9x8x8xbf16, #tpu.memory_space<vmem>>, vector<1x8x8xbf16>
    %151 = vector.shape_cast %150 : vector<1x8x8xbf16> to vector<8x8xbf16>
    %152 = arith.truncf %149 : vector<8x256xf32> to vector<8x256xbf16>
    %cst_107 = arith.constant dense<0.000000e+00> : vector<8x256xf32>
    %153 = tpu.matmul %151, %152, %cst_107 {dimension_numbers = #tpu.dot_dimension_numbers<[1], [0], [0], [1], [0, 0, 1, 1], [], []>} : vector<8x8xbf16>, vector<8x256xbf16>, vector<8x256xf32> -> vector<8x256xf32>
    %154 = arith.addf %144, %153 : vector<8x256xf32>
    %c241_i32_108 = arith.constant 241 : i32
    %155 = tpu.dynamic_rotate %98 by %c241_i32_108 dim 1 : vector<8x256xf32>, i32 -> vector<8x256xf32>
    %c6_109 = arith.constant 6 : index
    %c0_110 = arith.constant 0 : index
    %c0_111 = arith.constant 0 : index
    %156 = vector.load %arg4[%c6_109, %c0_110, %c0_111] : memref<9x1x256xf32, #tpu.memory_space<vmem>>, vector<1x1x256xf32>
    %157 = vector.shape_cast %156 : vector<1x1x256xf32> to vector<1x256xf32>
    %158 = vector.broadcast %157 : vector<1x256xf32> to vector<8x256xf32>
    %159 = arith.mulf %155, %158 : vector<8x256xf32>
    %c6_112 = arith.constant 6 : index
    %c0_113 = arith.constant 0 : index
    %c0_114 = arith.constant 0 : index
    %160 = vector.load %arg7[%c6_112, %c0_113, %c0_114] : memref<9x8x8xbf16, #tpu.memory_space<vmem>>, vector<1x8x8xbf16>
    %161 = vector.shape_cast %160 : vector<1x8x8xbf16> to vector<8x8xbf16>
    %162 = arith.truncf %159 : vector<8x256xf32> to vector<8x256xbf16>
    %cst_115 = arith.constant dense<0.000000e+00> : vector<8x256xf32>
    %163 = tpu.matmul %161, %162, %cst_115 {dimension_numbers = #tpu.dot_dimension_numbers<[1], [0], [0], [1], [0, 0, 1, 1], [], []>} : vector<8x8xbf16>, vector<8x256xbf16>, vector<8x256xf32> -> vector<8x256xf32>
    %164 = arith.addf %154, %163 : vector<8x256xf32>
    %c240_i32_116 = arith.constant 240 : i32
    %165 = tpu.dynamic_rotate %98 by %c240_i32_116 dim 1 : vector<8x256xf32>, i32 -> vector<8x256xf32>
    %c7_117 = arith.constant 7 : index
    %c0_118 = arith.constant 0 : index
    %c0_119 = arith.constant 0 : index
    %166 = vector.load %arg4[%c7_117, %c0_118, %c0_119] : memref<9x1x256xf32, #tpu.memory_space<vmem>>, vector<1x1x256xf32>
    %167 = vector.shape_cast %166 : vector<1x1x256xf32> to vector<1x256xf32>
    %168 = vector.broadcast %167 : vector<1x256xf32> to vector<8x256xf32>
    %169 = arith.mulf %165, %168 : vector<8x256xf32>
    %c7_120 = arith.constant 7 : index
    %c0_121 = arith.constant 0 : index
    %c0_122 = arith.constant 0 : index
    %170 = vector.load %arg7[%c7_120, %c0_121, %c0_122] : memref<9x8x8xbf16, #tpu.memory_space<vmem>>, vector<1x8x8xbf16>
    %171 = vector.shape_cast %170 : vector<1x8x8xbf16> to vector<8x8xbf16>
    %172 = arith.truncf %169 : vector<8x256xf32> to vector<8x256xbf16>
    %cst_123 = arith.constant dense<0.000000e+00> : vector<8x256xf32>
    %173 = tpu.matmul %171, %172, %cst_123 {dimension_numbers = #tpu.dot_dimension_numbers<[1], [0], [0], [1], [0, 0, 1, 1], [], []>} : vector<8x8xbf16>, vector<8x256xbf16>, vector<8x256xf32> -> vector<8x256xf32>
    %174 = arith.addf %164, %173 : vector<8x256xf32>
    %c239_i32_124 = arith.constant 239 : i32
    %175 = tpu.dynamic_rotate %98 by %c239_i32_124 dim 1 : vector<8x256xf32>, i32 -> vector<8x256xf32>
    %c8_125 = arith.constant 8 : index
    %c0_126 = arith.constant 0 : index
    %c0_127 = arith.constant 0 : index
    %176 = vector.load %arg4[%c8_125, %c0_126, %c0_127] : memref<9x1x256xf32, #tpu.memory_space<vmem>>, vector<1x1x256xf32>
    %177 = vector.shape_cast %176 : vector<1x1x256xf32> to vector<1x256xf32>
    %178 = vector.broadcast %177 : vector<1x256xf32> to vector<8x256xf32>
    %179 = arith.mulf %175, %178 : vector<8x256xf32>
    %c8_128 = arith.constant 8 : index
    %c0_129 = arith.constant 0 : index
    %c0_130 = arith.constant 0 : index
    %180 = vector.load %arg7[%c8_128, %c0_129, %c0_130] : memref<9x8x8xbf16, #tpu.memory_space<vmem>>, vector<1x8x8xbf16>
    %181 = vector.shape_cast %180 : vector<1x8x8xbf16> to vector<8x8xbf16>
    %182 = arith.truncf %179 : vector<8x256xf32> to vector<8x256xbf16>
    %cst_131 = arith.constant dense<0.000000e+00> : vector<8x256xf32>
    %183 = tpu.matmul %181, %182, %cst_131 {dimension_numbers = #tpu.dot_dimension_numbers<[1], [0], [0], [1], [0, 0, 1, 1], [], []>} : vector<8x8xbf16>, vector<8x256xbf16>, vector<8x256xf32> -> vector<8x256xf32>
    %184 = arith.addf %174, %183 : vector<8x256xf32>
    %c0_132 = arith.constant 0 : index
    %c0_133 = arith.constant 0 : index
    %185 = vector.load %arg8[%c0_132, %c0_133] : memref<8x1xf32, #tpu.memory_space<vmem>>, vector<8x1xf32>
    %186 = vector.broadcast %185 : vector<8x1xf32> to vector<8x256xf32>
    %187 = arith.addf %184, %186 : vector<8x256xf32>
    %cst_134 = arith.constant 0.000000e+00 : f32
    %188 = vector.broadcast %cst_134 : f32 to vector<8x256xf32>
    %189 = arith.maximumf %187, %188 : vector<8x256xf32>
    %c0_135 = arith.constant 0 : index
    %c0_136 = arith.constant 0 : index
    %c0_137 = arith.constant 0 : index
    %190 = vector.load %arg9[%c0_135, %c0_136, %c0_137] : memref<1x8x256xf32, #tpu.memory_space<vmem>>, vector<1x8x256xf32>
    %191 = vector.shape_cast %190 : vector<1x8x256xf32> to vector<8x256xf32>
    %192 = vector.shape_cast %189 : vector<8x256xf32> to vector<1x8x256xf32>
    tpu.vector_store %arg9[%c0_135, %c0_136, %c0_137], %192 {strides = array<i32>} : memref<1x8x256xf32, #tpu.memory_space<vmem>>, vector<1x8x256xf32>,
    return
  }
  func.func @transform_0(%arg0: i32) -> (i32, i32, i32) {
    %c0_i32 = arith.constant 0 : i32
    %c0_i32_0 = arith.constant 0 : i32
    %c0_i32_1 = arith.constant 0 : i32
    return %arg0, %c0_i32, %c0_i32_0 : i32, i32, i32
  }
  func.func @transform_1(%arg0: i32) -> (i32, i32, i32) {
    %c0_i32 = arith.constant 0 : i32
    %c0_i32_0 = arith.constant 0 : i32
    %c0_i32_1 = arith.constant 0 : i32
    return %arg0, %c0_i32, %c0_i32_0 : i32, i32, i32
  }
  func.func @transform_2(%arg0: i32) -> (i32, i32) {
    %c0_i32 = arith.constant 0 : i32
    %c0_i32_0 = arith.constant 0 : i32
    %c0_i32_1 = arith.constant 0 : i32
    return %c0_i32, %c0_i32_0 : i32, i32
  }
  func.func @transform_3(%arg0: i32) -> (i32, i32, i32) {
    %c0_i32 = arith.constant 0 : i32
    %c0_i32_0 = arith.constant 0 : i32
    %c0_i32_1 = arith.constant 0 : i32
    %c0_i32_2 = arith.constant 0 : i32
    return %c0_i32, %c0_i32_0, %c0_i32_1 : i32, i32, i32
  }
  func.func @transform_4(%arg0: i32) -> (i32, i32, i32) {
    %c0_i32 = arith.constant 0 : i32
    %c0_i32_0 = arith.constant 0 : i32
    %c0_i32_1 = arith.constant 0 : i32
    %c0_i32_2 = arith.constant 0 : i32
    return %c0_i32, %c0_i32_0, %c0_i32_1 : i32, i32, i32
  }
  func.func @transform_5(%arg0: i32) -> (i32, i32) {
    %c0_i32 = arith.constant 0 : i32
    %c0_i32_0 = arith.constant 0 : i32
    %c0_i32_1 = arith.constant 0 : i32
    return %c0_i32, %c0_i32_0 : i32, i32
  }
  func.func @transform_6(%arg0: i32) -> (i32, i32, i32) {
    %c0_i32 = arith.constant 0 : i32
    %c0_i32_0 = arith.constant 0 : i32
    %c0_i32_1 = arith.constant 0 : i32
    %c0_i32_2 = arith.constant 0 : i32
    return %c0_i32, %c0_i32_0, %c0_i32_1 : i32, i32, i32
  }
  func.func @transform_7(%arg0: i32) -> (i32, i32) {
    %c0_i32 = arith.constant 0 : i32
    %c0_i32_0 = arith.constant 0 : i32
    %c0_i32_1 = arith.constant 0 : i32
    return %c0_i32, %c0_i32_0 : i32, i32
  }
  func.func @transform_8(%arg0: i32) -> (i32, i32, i32) {
    %c0_i32 = arith.constant 0 : i32
    %c0_i32_0 = arith.constant 0 : i32
    %c0_i32_1 = arith.constant 0 : i32
    return %arg0, %c0_i32, %c0_i32_0 : i32, i32, i32
  }
}

</mosaic_0001>

<llo_original>
// kernel: tpu_custom_call.1
$region0: #{tpu_custom_call.1}
  #allocation0 [shape = 'u32[]', space=smem, size = 0x4, offset = 0x4, fixed_abs, tag = 'smem constant byte address 0x4 - core index']
  #allocation1 [shape = 'u32[72,128]{1,0:T(1,128)}', space=vmem, size = 0x9000, scoped, tag = 'internal scratch']
  %s0 = inlined_call_operand.vmem [shape: f32[2,4,64], index: 0, kind: input, shape index: {}]
  %s1 = inlined_call_operand.vmem [shape: f32[2,4,256], index: 1, kind: input, shape index: {}]
  %s2 = inlined_call_operand.vmem [shape: bf16[64,256], index: 2, kind: input, shape index: {}]
  %s3 = inlined_call_operand.vmem [shape: f32[9,1,256], index: 3, kind: input, shape index: {}]
  %s4 = inlined_call_operand.vmem [shape: bf16[9,8,8], index: 4, kind: input, shape index: {}]
  %s5 = inlined_call_operand.vmem [shape: f32[8,1], index: 5, kind: input, shape index: {}]
  %s6 = inlined_call_operand.vmem [shape: bf16[9,8,8], index: 6, kind: input, shape index: {}]
  %s7 = inlined_call_operand.vmem [shape: f32[8,1], index: 7, kind: input, shape index: {}]
  %s8 = inlined_call_operand.hbm [shape: f32[2,8,256], index: 8, kind: output, shape index: {}]
  %s9 = sld [smem:[#allocation0]]
  $region65: #{tpu_custom_call.1} parent=0
    _
  %s11 = ssub.s32 1, %s9
  %s12 = scalar_select 0, %s11, %s9
  $region1: #{tpu_custom_call.1} parent=0
    #allocation2 [shape = 'u8[16384]{0}', space=vmem, size = 0x4000, scoped, tag = 'output window, operand 0']
    #allocation3 [shape = 's32[2]{0}', space=sflag, size = 0x8, scoped, tag = 'scoped memory for tpu_custom_call.1']
    %13 = vsyncpa [#allocation3], 0
    %s14 = scalar_lea.sflag [#allocation3], 1
    %15 = vsyncpa %s14, 0
    loop: start=0, step=1, limit=4
    $region2: #{tpu_custom_call.1} parent=1 // loop_pre_header
      _
    $region3: #{tpu_custom_call.1} parent=1 // loop_header
      %s17 = sphi 0, %s21
      %p18 = scmp.ge.s32.totalorder %s17, 4
      %s27 = sphi 0, %s29
      %s30 = sphi 0, %s27
      %s31 = sphi 0, %s30
      %s47 = sphi 0, %s31
      %s53 = sphi 0, %s55
      %s56 = sphi 0, %s53
      %s57 = sphi 0, %s56
      %s73 = sphi 0, %s57
      %s77 = sphi 0, %s77
      %s79 = sphi 0, %s77
      %s80 = sphi 0, %s79
      %s94 = sphi 0, %s80
      %s98 = sphi 0, %s98
      %s100 = sphi 0, %s98
      %s101 = sphi 0, %s100
      %s115 = sphi 0, %s101
      %s119 = sphi 0, %s119
      %s121 = sphi 0, %s119
      %s122 = sphi 0, %s121
      %s136 = sphi 0, %s122
      %s140 = sphi 0, %s140
      %s142 = sphi 0, %s140
      %s143 = sphi 0, %s142
      %s157 = sphi 0, %s143
      %s161 = sphi 0, %s161
      %s163 = sphi 0, %s161
      %s164 = sphi 0, %s163
      %s178 = sphi 0, %s164
      %s182 = sphi 0, %s182
      %s184 = sphi 0, %s182
      %s185 = sphi 0, %s184
      %s199 = sphi 0, %s185
      %s205 = sphi 0, %s207
      %s208 = sphi 0, %s205
      %s209 = sphi 0, %s208
      %s225 = sphi 0, %s209
    $region4: #{tpu_custom_call.1} parent=1 // loop_header_branch
      %20 = sbr.rel (%p18) target = $region8
    $region5: #{tpu_custom_call.1} parent=1 // loop_body
      %s22 = ssub.s32 %s17, 1
      %s23 = ssub.s32 %s17, 2
      %s24 = sadd.s32 %s17, 1
      %s25 = ssub.s32 %s17, %s24
      %p26 = scmp.eq.s32.totalorder %s25, 0
      %s28 = sadd.s32 %s27, 1
      %s29 = scalar_select %p26, %s27, %s28
      %p32 = pneg %p26
      %p33 = scmp.eq.s32.totalorder %s17, 1
      %p34 = por %p32, %p33
      %p35 = scmp.ne.s32.totalorder %s27, %s30
      %p36 = scmp.eq.s32.totalorder %s17, 0
      %p37 = por %p35, %p36
      %p38 = scmp.ne.s32.totalorder %s27, %s30
      %p39 = scmp.eq.s32.totalorder %s22, 1
      %p40 = por %p38, %p39
      %p41 = scmp.ne.s32.totalorder %s30, %s31
      %p42 = scmp.eq.s32.totalorder %s22, 0
      %p43 = por %p41, %p42
      %p44 = scmp.ne.s32.totalorder %s30, %s31
      %p45 = scmp.eq.s32.totalorder %s23, 1
      %p46 = por %p44, %p45
      %p48 = scmp.ne.s32.totalorder %s31, %s47
      %p49 = scmp.eq.s32.totalorder %s23, 0
      %p50 = por %p48, %p49
      %s51 = ssub.s32 %s17, %s24
      %p52 = scmp.eq.s32.totalorder %s51, 0
      %s54 = sadd.s32 %s53, 1
      %s55 = scalar_select %p52, %s53, %s54
      %p58 = pneg %p52
      %p59 = scmp.eq.s32.totalorder %s17, 1
      %p60 = por %p58, %p59
      %p61 = scmp.ne.s32.totalorder %s53, %s56
      %p62 = scmp.eq.s32.totalorder %s17, 0
      %p63 = por %p61, %p62
      %p64 = scmp.ne.s32.totalorder %s53, %s56
      %p65 = scmp.eq.s32.totalorder %s22, 1
      %p66 = por %p64, %p65
      %p67 = scmp.ne.s32.totalorder %s56, %s57
      %p68 = scmp.eq.s32.totalorder %s22, 0
      %p69 = por %p67, %p68
      %p70 = scmp.ne.s32.totalorder %s56, %s57
      %p71 = scmp.eq.s32.totalorder %s23, 1
      %p72 = por %p70, %p71
      %p74 = scmp.ne.s32.totalorder %s57, %s73
      %p75 = scmp.eq.s32.totalorder %s23, 0
      %p76 = por %p74, %p75
      %s78 = sadd.s32 %s77, 1
      %p81 = scmp.eq.s32.totalorder %s17, 1
      %p82 = scmp.ne.s32.totalorder %s77, %s79
      %p83 = scmp.eq.s32.totalorder %s17, 0
      %p84 = por %p82, %p83
      %p85 = scmp.ne.s32.totalorder %s77, %s79
      %p86 = scmp.eq.s32.totalorder %s22, 1
      %p87 = por %p85, %p86
      %p88 = scmp.ne.s32.totalorder %s79, %s80
      %p89 = scmp.eq.s32.totalorder %s22, 0
      %p90 = por %p88, %p89
      %p91 = scmp.ne.s32.totalorder %s79, %s80
      %p92 = scmp.eq.s32.totalorder %s23, 1
      %p93 = por %p91, %p92
      %p95 = scmp.ne.s32.totalorder %s80, %s94
      %p96 = scmp.eq.s32.totalorder %s23, 0
      %p97 = por %p95, %p96
      %s99 = sadd.s32 %s98, 1
      %p102 = scmp.eq.s32.totalorder %s17, 1
      %p103 = scmp.ne.s32.totalorder %s98, %s100
      %p104 = scmp.eq.s32.totalorder %s17, 0
      %p105 = por %p103, %p104
      %p106 = scmp.ne.s32.totalorder %s98, %s100
      %p107 = scmp.eq.s32.totalorder %s22, 1
      %p108 = por %p106, %p107
      %p109 = scmp.ne.s32.totalorder %s100, %s101
      %p110 = scmp.eq.s32.totalorder %s22, 0
      %p111 = por %p109, %p110
      %p112 = scmp.ne.s32.totalorder %s100, %s101
      %p113 = scmp.eq.s32.totalorder %s23, 1
      %p114 = por %p112, %p113
      %p116 = scmp.ne.s32.totalorder %s101, %s115
      %p117 = scmp.eq.s32.totalorder %s23, 0
      %p118 = por %p116, %p117
      %s120 = sadd.s32 %s119, 1
      %p123 = scmp.eq.s32.totalorder %s17, 1
      %p124 = scmp.ne.s32.totalorder %s119, %s121
      %p125 = scmp.eq.s32.totalorder %s17, 0
      %p126 = por %p124, %p125
      %p127 = scmp.ne.s32.totalorder %s119, %s121
      %p128 = scmp.eq.s32.totalorder %s22, 1
      %p129 = por %p127, %p128
      %p130 = scmp.ne.s32.totalorder %s121, %s122
      %p131 = scmp.eq.s32.totalorder %s22, 0
      %p132 = por %p130, %p131
      %p133 = scmp.ne.s32.totalorder %s121, %s122
      %p134 = scmp.eq.s32.totalorder %s23, 1
      %p135 = por %p133, %p134
      %p137 = scmp.ne.s32.totalorder %s122, %s136
      %p138 = scmp.eq.s32.totalorder %s23, 0
      %p139 = por %p137, %p138
      %s141 = sadd.s32 %s140, 1
      %p144 = scmp.eq.s32.totalorder %s17, 1
      %p145 = scmp.ne.s32.totalorder %s140, %s142
      %p146 = scmp.eq.s32.totalorder %s17, 0
      %p147 = por %p145, %p146
      %p148 = scmp.ne.s32.totalorder %s140, %s142
      %p149 = scmp.eq.s32.totalorder %s22, 1
      %p150 = por %p148, %p149
      %p151 = scmp.ne.s32.totalorder %s142, %s143
      %p152 = scmp.eq.s32.totalorder %s22, 0
      %p153 = por %p151, %p152
      %p154 = scmp.ne.s32.totalorder %s142, %s143
      %p155 = scmp.eq.s32.totalorder %s23, 1
      %p156 = por %p154, %p155
      %p158 = scmp.ne.s32.totalorder %s143, %s157
      %p159 = scmp.eq.s32.totalorder %s23, 0
      %p160 = por %p158, %p159
      %s162 = sadd.s32 %s161, 1
      %p165 = scmp.eq.s32.totalorder %s17, 1
      %p166 = scmp.ne.s32.totalorder %s161, %s163
      %p167 = scmp.eq.s32.totalorder %s17, 0
      %p168 = por %p166, %p167
      %p169 = scmp.ne.s32.totalorder %s161, %s163
      %p170 = scmp.eq.s32.totalorder %s22, 1
      %p171 = por %p169, %p170
      %p172 = scmp.ne.s32.totalorder %s163, %s164
      %p173 = scmp.eq.s32.totalorder %s22, 0
      %p174 = por %p172, %p173
      %p175 = scmp.ne.s32.totalorder %s163, %s164
      %p176 = scmp.eq.s32.totalorder %s23, 1
      %p177 = por %p175, %p176
      %p179 = scmp.ne.s32.totalorder %s164, %s178
      %p180 = scmp.eq.s32.totalorder %s23, 0
      %p181 = por %p179, %p180
      %s183 = sadd.s32 %s182, 1
      %p186 = scmp.eq.s32.totalorder %s17, 1
      %p187 = scmp.ne.s32.totalorder %s182, %s184
      %p188 = scmp.eq.s32.totalorder %s17, 0
      %p189 = por %p187, %p188
      %p190 = scmp.ne.s32.totalorder %s182, %s184
      %p191 = scmp.eq.s32.totalorder %s22, 1
      %p192 = por %p190, %p191
      %p193 = scmp.ne.s32.totalorder %s184, %s185
      %p194 = scmp.eq.s32.totalorder %s22, 0
      %p195 = por %p193, %p194
      %p196 = scmp.ne.s32.totalorder %s184, %s185
      %p197 = scmp.eq.s32.totalorder %s23, 1
      %p198 = por %p196, %p197
      %p200 = scmp.ne.s32.totalorder %s185, %s199
      %p201 = scmp.eq.s32.totalorder %s23, 0
      %p202 = por %p200, %p201
      %s203 = ssub.s32 %s17, %s24
      %p204 = scmp.eq.s32.totalorder %s203, 0
      %s206 = sadd.s32 %s205, 1
      %s207 = scalar_select %p204, %s205, %s206
      %p210 = pneg %p204
      %p211 = scmp.eq.s32.totalorder %s17, 1
      %p212 = por %p210, %p211
      %p213 = scmp.ne.s32.totalorder %s205, %s208
      %p214 = scmp.eq.s32.totalorder %s17, 0
      %p215 = por %p213, %p214
      %p216 = scmp.ne.s32.totalorder %s205, %s208
      %p217 = scmp.eq.s32.totalorder %s22, 1
      %p218 = por %p216, %p217
      %p219 = scmp.ne.s32.totalorder %s208, %s209
      %p220 = scmp.eq.s32.totalorder %s22, 0
      %p221 = por %p219, %p220
      %p222 = scmp.ne.s32.totalorder %s208, %s209
      %p223 = scmp.eq.s32.totalorder %s23, 1
      %p224 = por %p222, %p223
      %p226 = scmp.ne.s32.totalorder %s209, %s225
      %p227 = scmp.eq.s32.totalorder %s23, 0
      %p228 = por %p226, %p227
      %p229 = scmp.le.s32.totalorder 1, %s17
      %p230 = scmp.lt.s32.totalorder %s17, 3
      %p231 = pnand %p229, %p230
      %p232 = pneg %p231
      // Predicated region
      $region9: #{tpu_custom_call.1} parent=5 // pred_check
        _
      $region10: #{tpu_custom_call.1} parent=5 // pred_check_branch
        %234 = sbr.rel (%p231) target = $region12
      $region11: #{tpu_custom_call.1} parent=5 // pred_region
        %s235 = ssub.s32 %s17, 1
        // Predicated region
        $region13: #{tpu_custom_call.1} parent=11 // pred_check
          %p236 = pneg %p90
        $region14: #{tpu_custom_call.1} parent=11 // pred_check_branch
          %238 = sbr.rel (%p236) target = $region16
        $region15: #{tpu_custom_call.1} parent=11 // pred_region
          _
        $region16: #{tpu_custom_call.1} parent=11 // pred_fallthru
          _
        // Predicated region
        $region17: #{tpu_custom_call.1} parent=11 // pred_check
          %p239 = pneg %p111
        $region18: #{tpu_custom_call.1} parent=11 // pred_check_branch
          %241 = sbr.rel (%p239) target = $region20
        $region19: #{tpu_custom_call.1} parent=11 // pred_region
          _
        $region20: #{tpu_custom_call.1} parent=11 // pred_fallthru
          _
        // Predicated region
        $region21: #{tpu_custom_call.1} parent=11 // pred_check
          %p242 = pneg %p132
        $region22: #{tpu_custom_call.1} parent=11 // pred_check_branch
          %244 = sbr.rel (%p242) target = $region24
        $region23: #{tpu_custom_call.1} parent=11 // pred_region
          _
        $region24: #{tpu_custom_call.1} parent=11 // pred_fallthru
          _
        // Predicated region
        $region25: #{tpu_custom_call.1} parent=11 // pred_check
          %p245 = pneg %p153
        $region26: #{tpu_custom_call.1} parent=11 // pred_check_branch
          %247 = sbr.rel (%p245) target = $region28
        $region27: #{tpu_custom_call.1} parent=11 // pred_region
          _
        $region28: #{tpu_custom_call.1} parent=11 // pred_fallthru
          _
        // Predicated region
        $region29: #{tpu_custom_call.1} parent=11 // pred_check
          %p248 = pneg %p174
        $region30: #{tpu_custom_call.1} parent=11 // pred_check_branch
          %250 = sbr.rel (%p248) target = $region32
        $region31: #{tpu_custom_call.1} parent=11 // pred_region
          _
        $region32: #{tpu_custom_call.1} parent=11 // pred_fallthru
          _
        // Predicated region
        $region33: #{tpu_custom_call.1} parent=11 // pred_check
          %p251 = pneg %p195
        $region34: #{tpu_custom_call.1} parent=11 // pred_check_branch
          %253 = sbr.rel (%p251) target = $region36
        $region35: #{tpu_custom_call.1} parent=11 // pred_region
          _
        $region36: #{tpu_custom_call.1} parent=11 // pred_fallthru
          _
      $region12: #{tpu_custom_call.1} parent=5 // pred_fallthru
        _
      %p254 = scmp.lt.s32.totalorder %s17, 2
      // Predicated region
      $region37: #{tpu_custom_call.1} parent=5 // pred_check
        %p255 = pneg %p254
      $region38: #{tpu_custom_call.1} parent=5 // pred_check_branch
        %257 = sbr.rel (%p255) target = $region40
      $region39: #{tpu_custom_call.1} parent=5 // pred_region
        // Predicated region
        $region41: #{tpu_custom_call.1} parent=39 // pred_check
          %p258 = pneg %p37
        $region42: #{tpu_custom_call.1} parent=39 // pred_check_branch
          %260 = sbr.rel (%p258) target = $region44
        $region43: #{tpu_custom_call.1} parent=39 // pred_region
          %p261 = scmp.lt.s32.totalorder %s17, 1
          %s262 = scalar_select %p261, %s17, 1
          %s263 = smul.addr %s262, 4
          %s264 = scalar_lea.vmem %s0, %s263
        $region44: #{tpu_custom_call.1} parent=39 // pred_fallthru
          _
        // Predicated region
        $region45: #{tpu_custom_call.1} parent=39 // pred_check
          %p265 = pneg %p63
        $region46: #{tpu_custom_call.1} parent=39 // pred_check_branch
          %267 = sbr.rel (%p265) target = $region48
        $region47: #{tpu_custom_call.1} parent=39 // pred_region
          %p268 = scmp.lt.s32.totalorder %s17, 1
          %s269 = scalar_select %p268, %s17, 1
          %s270 = smul.addr %s269, 2
          %s271 = smul.addr %s270, 4
          %s272 = scalar_lea.vmem %s1, %s271
        $region48: #{tpu_custom_call.1} parent=39 // pred_fallthru
          _
      $region40: #{tpu_custom_call.1} parent=5 // pred_fallthru
        _
      %p273 = scmp.le.s32.totalorder 1, %s17
      %p274 = scmp.lt.s32.totalorder %s17, 3
      %p275 = pnand %p273, %p274
      %p276 = pneg %p275
      // Predicated region
      $region49: #{tpu_custom_call.1} parent=5 // pred_check
        _
      $region50: #{tpu_custom_call.1} parent=5 // pred_check_branch
        %278 = sbr.rel (%p275) target = $region52
      $region51: #{tpu_custom_call.1} parent=5 // pred_region
        %s279 = ssub.s32 %s17, 1
        %p280 = scmp.lt.s32.totalorder %s22, 1
        %s281 = scalar_select %p280, %s22, 1
        %s282 = smul.addr %s281, 4
        %s283 = scalar_lea.vmem %s0, %s282
        %p284 = pneg %p43
        %p285 = pneg %p40
        %p286 = scmp.lt.s32.totalorder %s22, 1
        %s287 = scalar_select %p286, %s22, 1
        %s288 = smul.addr %s287, 2
        %s289 = smul.addr %s288, 4
        %s290 = scalar_lea.vmem %s1, %s289
        %p291 = pneg %p69
        %p292 = pneg %p66
        %p293 = pneg %p90
        %p294 = pneg %p87
        %p295 = pneg %p111
        %p296 = pneg %p108
        %p297 = pneg %p132
        %p298 = pneg %p129
        %p299 = pneg %p153
        %p300 = pneg %p150
        %p301 = pneg %p174
        %p302 = pneg %p171
        %p303 = pneg %p195
        %p304 = pneg %p192
        %p305 = pneg %p221
        %p306 = pneg %p218
        %s307 = sand.u32 %s208, 1
        %s308 = scalar_lea.sflag [#allocation3], %s307
        %s309 = sand.u32 %s208, 1
        %s310 = smul.addr %s309, 16
        %s311 = scalar_lea.vmem [#allocation2], %s310
        %p312 = scmp.lt.s32.totalorder %s22, 1
        %s313 = scalar_select %p312, %s22, 1
        %s314 = smul.addr %s313, 4
        %s315 = scalar_lea.vmem %s0, %s314
        %p316 = scmp.lt.s32.totalorder %s22, 1
        %s317 = scalar_select %p316, %s22, 1
        %s318 = smul.addr %s317, 2
        %s319 = smul.addr %s318, 4
        %s320 = scalar_lea.vmem %s1, %s319
        %v322 = vld [vmem:[%s315] sm:$0xf]
        %v323 = vld [vmem:[%s320] sm:$0xff]
        %v324 = vpack.c.bf16 %v322, %v322
        %v325 = vld [vmem:[%s2] sm:$0xff]
        %v326 = vld [vmem:[%s2 + $0x8] sm:$0xff]
        %v327 = vld [vmem:[%s2 + $0x10] sm:$0xff]
        %v328 = vld [vmem:[%s2 + $0x18] sm:$0xff]
        %v329 = vld [vmem:[%s2 + $0x20] sm:$0xff]
        %v330 = vld [vmem:[%s2 + $0x28] sm:$0xff]
        %v331 = vld [vmem:[%s2 + $0x30] sm:$0xff]
        %v332 = vld [vmem:[%s2 + $0x38] sm:$0xff]
        %v341 = vunpack.c.l.b16 %v325
        %v342 = vunpack.c.h.b16 %v325
        %v343 = vunpack.c.l.b16 %v326
        %v344 = vunpack.c.h.b16 %v326
        %v345 = vunpack.c.l.b16 %v327
        %v346 = vunpack.c.h.b16 %v327
        %v347 = vunpack.c.l.b16 %v328
        %v348 = vunpack.c.h.b16 %v328
        %v349 = vunpack.c.l.b16 %v329
        %v350 = vunpack.c.h.b16 %v329
        %v351 = vunpack.c.l.b16 %v330
        %v352 = vunpack.c.h.b16 %v330
        %v353 = vunpack.c.l.b16 %v331
        %v354 = vunpack.c.h.b16 %v331
        %v355 = vunpack.c.l.b16 %v332
        %v356 = vunpack.c.h.b16 %v332
        %v357 = vpack.c.b16 %v343, %v341
        %v358 = vpack.c.b16 %v344, %v342
        %v359 = vpack.c.b16 %v347, %v345
        %v360 = vpack.c.b16 %v348, %v346
        %v361 = vpack.c.b16 %v351, %v349
        %v362 = vpack.c.b16 %v352, %v350
        %v363 = vpack.c.b16 %v355, %v353
        %v364 = vpack.c.b16 %v356, %v354
        %vm373 = vcmask 523264
        %v375 = vsel %vm373, %v324, 0
        %377 = vmatpush.bf16.msra.mxu0 0
        %378 = vmatpush.bf16.msra.mxu0 0
        %379 = vmatpush.bf16.msra.mxu0 0
        %380 = vmatpush.bf16.msra.mxu0 0
        %381 = vmatpush.bf16.msra.mxu0 %v363
        %382 = vmatpush.bf16.msra.mxu0 %v361
        %383 = vmatpush.bf16.msra.mxu0 %v359
        %384 = vmatpush.bf16.msra.mxu0 %v357
        %385 = vmatmul.bf16.gmra.mxu0 %v375
        %v386 = vpop.f32.mrf.mxu0
        %v387 = vadd.f32 0.0, %v386
        %v388 = vpop.f32.mrf.mxu0
        %389 = vdwg.mxu0
        %390 = vmatpush.bf16.msra.mxu0 0
        %391 = vmatpush.bf16.msra.mxu0 0
        %392 = vmatpush.bf16.msra.mxu0 0
        %393 = vmatpush.bf16.msra.mxu0 0
        %394 = vmatpush.bf16.msra.mxu0 %v364
        %395 = vmatpush.bf16.msra.mxu0 %v362
        %396 = vmatpush.bf16.msra.mxu0 %v360
        %397 = vmatpush.bf16.msra.mxu0 %v358
        %398 = vmatmul.bf16.gmra.mxu0 %v375
        %v399 = vpop.f32.mrf.mxu0
        %v400 = vadd.f32 0.0, %v399
        %v401 = vpop.f32.mrf.mxu0
        %402 = vdwg.mxu0
        %404 = vst [vmem:[#allocation1] ss:$2 sm:$0xff] %v323
        %v405 = vld.sshfl [vmem:[#allocation1] sm:$0xff pattern:$0x75316420]
        %v406 = vld.sshfl [vmem:[#allocation1 + $0x8] sm:$0xff pattern:$0x75316420]
        %v411 = vrot.slane %v387, 4
        %v412 = vrot.slane %v400, 4
        %vm415 = vcmask 1043456
        %v416 = vsel %vm415, %v405, %v411
        %v417 = vsel %vm415, %v406, %v412
        %418 = vrot.lane.b32.xlu0 %v416, 17
        %v419 = vpop.permute.xlu0 %418
        %420 = vrot.lane.b32.xlu0 %v417, 17
        %v421 = vpop.permute.xlu0 %420
        %v422 = vlaneseq
        %v423 = vand.u32 %v422, 127
        %vm424 = vcmp.lt.s32.totalorder %v423, 17
        %v425 = vsel %vm424, %v419, %v421
        %v426 = vsel %vm424, %v421, %v419
        %v427 = vld [vmem:[%s3] sm:$0x3]
        %v429 = vperm.slane %v427, 0
        %v430 = vperm.slane %v427, 1
        %v433 = vmul.f32 %v426, %v429
        %v434 = vmul.f32 %v425, %v430
        %v435 = vld [vmem:[%s4] sm:$0xf]
        %v436 = vpack.c.bf16 %v433, %v433
        %v437 = vpack.c.bf16 %v434, %v434
        %438 = vrot.lane.b32.xlu0 %v416, 16
        %v439 = vpop.permute.xlu0 %438
        %440 = vrot.lane.b32.xlu0 %v417, 16
        %v441 = vpop.permute.xlu0 %440
        %vm442 = vcmp.lt.s32.totalorder %v423, 16
        %v443 = vsel %vm442, %v439, %v441
        %v444 = vsel %vm442, %v441, %v439
        %s445 = scalar_lea.vmem %s3, 2
        %v446 = vld [vmem:[%s445] sm:$0x3]
        %v448 = vperm.slane %v446, 0
        %v449 = vperm.slane %v446, 1
        %v452 = vmul.f32 %v444, %v448
        %v453 = vmul.f32 %v443, %v449
        %s454 = scalar_lea.vmem %s4, 4
        %v455 = vld [vmem:[%s454] sm:$0xf]
        %v456 = vpack.c.bf16 %v452, %v452
        %v457 = vpack.c.bf16 %v453, %v453
        %vm458 = vcmask 64512
        %v460 = vsel %vm458, %v455, 0
        %v463 = vsel %vm415, %v456, 0
        %v466 = vsel %vm415, %v457, 0
        %468 = vmatpush.bf16.msra.mxu0 0
        %469 = vmatpush.bf16.msra.mxu0 0
        %470 = vmatpush.bf16.msra.mxu0 0
        %471 = vmatpush.bf16.msra.mxu0 0
        %472 = vmatpush.bf16.msra.mxu0 0
        %473 = vmatpush.bf16.msra.mxu0 0
        %474 = vmatpush.bf16.msra.mxu0 0
        %475 = vmatpush.bf16.msra.mxu0 %v463
        %476 = vmatmul.bf16.gmra.mxu0 %v460
        %v477 = vpop.f32.mrf.mxu0
        %v478 = vadd.f32 0.0, %v477
        %v479 = vpop.f32.mrf.mxu0
        %480 = vdwg.mxu0
        %481 = vmatpush.bf16.msra.mxu0 0
        %482 = vmatpush.bf16.msra.mxu0 0
        %483 = vmatpush.bf16.msra.mxu0 0
        %484 = vmatpush.bf16.msra.mxu0 0
        %485 = vmatpush.bf16.msra.mxu0 0
        %486 = vmatpush.bf16.msra.mxu0 0
        %487 = vmatpush.bf16.msra.mxu0 0
        %488 = vmatpush.bf16.msra.mxu0 %v466
        %489 = vmatmul.bf16.gmra.mxu0 %v460
        %v490 = vpop.f32.mrf.mxu0
        %v491 = vadd.f32 0.0, %v490
        %v492 = vpop.f32.mrf.mxu0
        %493 = vdwg.mxu0
        %v495 = vsel %vm458, %v435, 0
        %v498 = vsel %vm415, %v436, 0
        %v501 = vsel %vm415, %v437, 0
        %503 = vmatpush.bf16.msra.mxu0 0
        %504 = vmatpush.bf16.msra.mxu0 0
        %505 = vmatpush.bf16.msra.mxu0 0
        %506 = vmatpush.bf16.msra.mxu0 0
        %507 = vmatpush.bf16.msra.mxu0 0
        %508 = vmatpush.bf16.msra.mxu0 0
        %509 = vmatpush.bf16.msra.mxu0 0
        %510 = vmatpush.bf16.msra.mxu0 %v498
        %511 = vmatmul.bf16.gmra.mxu0 %v495
        %v512 = vpop.f32.mrf.mxu0
        %v513 = vadd.f32 %v478, %v512
        %v514 = vpop.f32.mrf.mxu0
        %515 = vdwg.mxu0
        %516 = vmatpush.bf16.msra.mxu0 0
        %517 = vmatpush.bf16.msra.mxu0 0
        %518 = vmatpush.bf16.msra.mxu0 0
        %519 = vmatpush.bf16.msra.mxu0 0
        %520 = vmatpush.bf16.msra.mxu0 0
        %521 = vmatpush.bf16.msra.mxu0 0
        %522 = vmatpush.bf16.msra.mxu0 0
        %523 = vmatpush.bf16.msra.mxu0 %v501
        %524 = vmatmul.bf16.gmra.mxu0 %v495
        %v525 = vpop.f32.mrf.mxu0
        %v526 = vadd.f32 %v491, %v525
        %v527 = vpop.f32.mrf.mxu0
        %528 = vdwg.mxu0
        %529 = vrot.lane.b32.xlu0 %v416, 15
        %v530 = vpop.permute.xlu0 %529
        %531 = vrot.lane.b32.xlu0 %v417, 15
        %v532 = vpop.permute.xlu0 %531
        %vm533 = vcmp.lt.s32.totalorder %v423, 15
        %v534 = vsel %vm533, %v530, %v532
        %v535 = vsel %vm533, %v532, %v530
        %s536 = scalar_lea.vmem %s3, 4
        %v537 = vld [vmem:[%s536] sm:$0x3]
        %v539 = vperm.slane %v537, 0
        %v540 = vperm.slane %v537, 1
        %v543 = vmul.f32 %v535, %v539
        %v544 = vmul.f32 %v534, %v540
        %s545 = scalar_lea.vmem %s4, 8
        %v546 = vld [vmem:[%s545] sm:$0xf]
        %v547 = vpack.c.bf16 %v543, %v543
        %v548 = vpack.c.bf16 %v544, %v544
        %v550 = vsel %vm458, %v546, 0
        %v553 = vsel %vm415, %v547, 0
        %v556 = vsel %vm415, %v548, 0
        %558 = vmatpush.bf16.msra.mxu0 0
        %559 = vmatpush.bf16.msra.mxu0 0
        %560 = vmatpush.bf16.msra.mxu0 0
        %561 = vmatpush.bf16.msra.mxu0 0
        %562 = vmatpush.bf16.msra.mxu0 0
        %563 = vmatpush.bf16.msra.mxu0 0
        %564 = vmatpush.bf16.msra.mxu0 0
        %565 = vmatpush.bf16.msra.mxu0 %v553
        %566 = vmatmul.bf16.gmra.mxu0 %v550
        %v567 = vpop.f32.mrf.mxu0
        %v568 = vadd.f32 0.0, %v567
        %v569 = vpop.f32.mrf.mxu0
        %570 = vdwg.mxu0
        %571 = vmatpush.bf16.msra.mxu0 0
        %572 = vmatpush.bf16.msra.mxu0 0
        %573 = vmatpush.bf16.msra.mxu0 0
        %574 = vmatpush.bf16.msra.mxu0 0
        %575 = vmatpush.bf16.msra.mxu0 0
        %576 = vmatpush.bf16.msra.mxu0 0
        %577 = vmatpush.bf16.msra.mxu0 0
        %578 = vmatpush.bf16.msra.mxu0 %v556
        %579 = vmatmul.bf16.gmra.mxu0 %v550
        %v580 = vpop.f32.mrf.mxu0
        %v581 = vadd.f32 0.0, %v580
        %v582 = vpop.f32.mrf.mxu0
        %583 = vdwg.mxu0
        %v584 = vadd.f32 %v513, %v568
        %v585 = vadd.f32 %v526, %v581
        %586 = vrot.lane.b32.xlu0 %v416, 1
        %v587 = vpop.permute.xlu0 %586
        %588 = vrot.lane.b32.xlu0 %v417, 1
        %v589 = vpop.permute.xlu0 %588
        %vm590 = vcmp.lt.s32.totalorder %v423, 1
        %v591 = vsel %vm590, %v587, %v589
        %v592 = vsel %vm590, %v589, %v587
        %s593 = scalar_lea.vmem %s3, 6
        %v594 = vld [vmem:[%s593] sm:$0x3]
        %v596 = vperm.slane %v594, 0
        %v597 = vperm.slane %v594, 1
        %v600 = vmul.f32 %v592, %v596
        %v601 = vmul.f32 %v591, %v597
        %s602 = scalar_lea.vmem %s4, 12
        %v603 = vld [vmem:[%s602] sm:$0xf]
        %v604 = vpack.c.bf16 %v600, %v600
        %v605 = vpack.c.bf16 %v601, %v601
        %v607 = vsel %vm458, %v603, 0
        %v610 = vsel %vm415, %v604, 0
        %v613 = vsel %vm415, %v605, 0
        %615 = vmatpush.bf16.msra.mxu0 0
        %616 = vmatpush.bf16.msra.mxu0 0
        %617 = vmatpush.bf16.msra.mxu0 0
        %618 = vmatpush.bf16.msra.mxu0 0
        %619 = vmatpush.bf16.msra.mxu0 0
        %620 = vmatpush.bf16.msra.mxu0 0
        %621 = vmatpush.bf16.msra.mxu0 0
        %622 = vmatpush.bf16.msra.mxu0 %v610
        %623 = vmatmul.bf16.gmra.mxu0 %v607
        %v624 = vpop.f32.mrf.mxu0
        %v625 = vadd.f32 0.0, %v624
        %v626 = vpop.f32.mrf.mxu0
        %627 = vdwg.mxu0
        %628 = vmatpush.bf16.msra.mxu0 0
        %629 = vmatpush.bf16.msra.mxu0 0
        %630 = vmatpush.bf16.msra.mxu0 0
        %631 = vmatpush.bf16.msra.mxu0 0
        %632 = vmatpush.bf16.msra.mxu0 0
        %633 = vmatpush.bf16.msra.mxu0 0
        %634 = vmatpush.bf16.msra.mxu0 0
        %635 = vmatpush.bf16.msra.mxu0 %v613
        %636 = vmatmul.bf16.gmra.mxu0 %v607
        %v637 = vpop.f32.mrf.mxu0
        %v638 = vadd.f32 0.0, %v637
        %v639 = vpop.f32.mrf.mxu0
        %640 = vdwg.mxu0
        %v641 = vadd.f32 %v584, %v625
        %v642 = vadd.f32 %v585, %v638
        %s643 = scalar_lea.vmem %s4, 16
        %v644 = vld [vmem:[%s643] sm:$0xf]
        %v645 = vpack.c.bf16 %v416, %v416
        %v646 = vpack.c.bf16 %v417, %v417
        %v648 = vsel %vm458, %v644, 0
        %v651 = vsel %vm415, %v645, 0
        %v654 = vsel %vm415, %v646, 0
        %656 = vmatpush.bf16.msra.mxu0 0
        %657 = vmatpush.bf16.msra.mxu0 0
        %658 = vmatpush.bf16.msra.mxu0 0
        %659 = vmatpush.bf16.msra.mxu0 0
        %660 = vmatpush.bf16.msra.mxu0 0
        %661 = vmatpush.bf16.msra.mxu0 0
        %662 = vmatpush.bf16.msra.mxu0 0
        %663 = vmatpush.bf16.msra.mxu0 %v651
        %664 = vmatmul.bf16.gmra.mxu0 %v648
        %v665 = vpop.f32.mrf.mxu0
        %v666 = vadd.f32 0.0, %v665
        %v667 = vpop.f32.mrf.mxu0
        %668 = vdwg.mxu0
        %669 = vmatpush.bf16.msra.mxu0 0
        %670 = vmatpush.bf16.msra.mxu0 0
        %671 = vmatpush.bf16.msra.mxu0 0
        %672 = vmatpush.bf16.msra.mxu0 0
        %673 = vmatpush.bf16.msra.mxu0 0
        %674 = vmatpush.bf16.msra.mxu0 0
        %675 = vmatpush.bf16.msra.mxu0 0
        %676 = vmatpush.bf16.msra.mxu0 %v654
        %677 = vmatmul.bf16.gmra.mxu0 %v648
        %v678 = vpop.f32.mrf.mxu0
        %v679 = vadd.f32 0.0, %v678
        %v680 = vpop.f32.mrf.mxu0
        %681 = vdwg.mxu0
        %v682 = vadd.f32 %v641, %v666
        %v683 = vadd.f32 %v642, %v679
        %684 = vrot.lane.b32.xlu0 %v416, 127
        %v685 = vpop.permute.xlu0 %684
        %686 = vrot.lane.b32.xlu0 %v417, 127
        %v687 = vpop.permute.xlu0 %686
        %vm688 = vcmp.lt.s32.totalorder %v423, 127
        %v689 = vsel %vm688, %v685, %v687
        %v690 = vsel %vm688, %v687, %v685
        %s691 = scalar_lea.vmem %s3, 10
        %v692 = vld [vmem:[%s691] sm:$0x3]
        %v694 = vperm.slane %v692, 0
        %v695 = vperm.slane %v692, 1
        %v698 = vmul.f32 %v689, %v694
        %v699 = vmul.f32 %v690, %v695
        %s700 = scalar_lea.vmem %s4, 20
        %v701 = vld [vmem:[%s700] sm:$0xf]
        %v702 = vpack.c.bf16 %v698, %v698
        %v703 = vpack.c.bf16 %v699, %v699
        %v705 = vsel %vm458, %v701, 0
        %v708 = vsel %vm415, %v702, 0
        %v711 = vsel %vm415, %v703, 0
        %713 = vmatpush.bf16.msra.mxu0 0
        %714 = vmatpush.bf16.msra.mxu0 0
        %715 = vmatpush.bf16.msra.mxu0 0
        %716 = vmatpush.bf16.msra.mxu0 0
        %717 = vmatpush.bf16.msra.mxu0 0
        %718 = vmatpush.bf16.msra.mxu0 0
        %719 = vmatpush.bf16.msra.mxu0 0
        %720 = vmatpush.bf16.msra.mxu0 %v708
        %721 = vmatmul.bf16.gmra.mxu0 %v705
        %v722 = vpop.f32.mrf.mxu0
        %v723 = vadd.f32 0.0, %v722
        %v724 = vpop.f32.mrf.mxu0
        %725 = vdwg.mxu0
        %726 = vmatpush.bf16.msra.mxu0 0
        %727 = vmatpush.bf16.msra.mxu0 0
        %728 = vmatpush.bf16.msra.mxu0 0
        %729 = vmatpush.bf16.msra.mxu0 0
        %730 = vmatpush.bf16.msra.mxu0 0
        %731 = vmatpush.bf16.msra.mxu0 0
        %732 = vmatpush.bf16.msra.mxu0 0
        %733 = vmatpush.bf16.msra.mxu0 %v711
        %734 = vmatmul.bf16.gmra.mxu0 %v705
        %v735 = vpop.f32.mrf.mxu0
        %v736 = vadd.f32 0.0, %v735
        %v737 = vpop.f32.mrf.mxu0
        %738 = vdwg.mxu0
        %v739 = vadd.f32 %v682, %v723
        %v740 = vadd.f32 %v683, %v736
        %741 = vrot.lane.b32.xlu0 %v416, 113
        %v742 = vpop.permute.xlu0 %741
        %743 = vrot.lane.b32.xlu0 %v417, 113
        %v744 = vpop.permute.xlu0 %743
        %vm745 = vcmp.lt.s32.totalorder %v423, 113
        %v746 = vsel %vm745, %v742, %v744
        %v747 = vsel %vm745, %v744, %v742
        %s748 = scalar_lea.vmem %s3, 12
        %v749 = vld [vmem:[%s748] sm:$0x3]
        %v751 = vperm.slane %v749, 0
        %v752 = vperm.slane %v749, 1
        %v755 = vmul.f32 %v746, %v751
        %v756 = vmul.f32 %v747, %v752
        %s757 = scalar_lea.vmem %s4, 24
        %v758 = vld [vmem:[%s757] sm:$0xf]
        %v759 = vpack.c.bf16 %v755, %v755
        %v760 = vpack.c.bf16 %v756, %v756
        %v762 = vsel %vm458, %v758, 0
        %v765 = vsel %vm415, %v759, 0
        %v768 = vsel %vm415, %v760, 0
        %770 = vmatpush.bf16.msra.mxu0 0
        %771 = vmatpush.bf16.msra.mxu0 0
        %772 = vmatpush.bf16.msra.mxu0 0
        %773 = vmatpush.bf16.msra.mxu0 0
        %774 = vmatpush.bf16.msra.mxu0 0
        %775 = vmatpush.bf16.msra.mxu0 0
        %776 = vmatpush.bf16.msra.mxu0 0
        %777 = vmatpush.bf16.msra.mxu0 %v765
        %778 = vmatmul.bf16.gmra.mxu0 %v762
        %v779 = vpop.f32.mrf.mxu0
        %v780 = vadd.f32 0.0, %v779
        %v781 = vpop.f32.mrf.mxu0
        %782 = vdwg.mxu0
        %783 = vmatpush.bf16.msra.mxu0 0
        %784 = vmatpush.bf16.msra.mxu0 0
        %785 = vmatpush.bf16.msra.mxu0 0
        %786 = vmatpush.bf16.msra.mxu0 0
        %787 = vmatpush.bf16.msra.mxu0 0
        %788 = vmatpush.bf16.msra.mxu0 0
        %789 = vmatpush.bf16.msra.mxu0 0
        %790 = vmatpush.bf16.msra.mxu0 %v768
        %791 = vmatmul.bf16.gmra.mxu0 %v762
        %v792 = vpop.f32.mrf.mxu0
        %v793 = vadd.f32 0.0, %v792
        %v794 = vpop.f32.mrf.mxu0
        %795 = vdwg.mxu0
        %v796 = vadd.f32 %v739, %v780
        %v797 = vadd.f32 %v740, %v793
        %798 = vrot.lane.b32.xlu0 %v416, 112
        %v799 = vpop.permute.xlu0 %798
        %800 = vrot.lane.b32.xlu0 %v417, 112
        %v801 = vpop.permute.xlu0 %800
        %vm802 = vcmp.lt.s32.totalorder %v423, 112
        %v803 = vsel %vm802, %v799, %v801
        %v804 = vsel %vm802, %v801, %v799
        %s805 = scalar_lea.vmem %s3, 14
        %v806 = vld [vmem:[%s805] sm:$0x3]
        %v808 = vperm.slane %v806, 0
        %v809 = vperm.slane %v806, 1
        %v812 = vmul.f32 %v803, %v808
        %v813 = vmul.f32 %v804, %v809
        %s814 = scalar_lea.vmem %s4, 28
        %v815 = vld [vmem:[%s814] sm:$0xf]
        %v816 = vpack.c.bf16 %v812, %v812
        %v817 = vpack.c.bf16 %v813, %v813
        %v819 = vsel %vm458, %v815, 0
        %v822 = vsel %vm415, %v816, 0
        %v825 = vsel %vm415, %v817, 0
        %827 = vmatpush.bf16.msra.mxu0 0
        %828 = vmatpush.bf16.msra.mxu0 0
        %829 = vmatpush.bf16.msra.mxu0 0
        %830 = vmatpush.bf16.msra.mxu0 0
        %831 = vmatpush.bf16.msra.mxu0 0
        %832 = vmatpush.bf16.msra.mxu0 0
        %833 = vmatpush.bf16.msra.mxu0 0
        %834 = vmatpush.bf16.msra.mxu0 %v822
        %835 = vmatmul.bf16.gmra.mxu0 %v819
        %v836 = vpop.f32.mrf.mxu0
        %v837 = vadd.f32 0.0, %v836
        %v838 = vpop.f32.mrf.mxu0
        %839 = vdwg.mxu0
        %840 = vmatpush.bf16.msra.mxu0 0
        %841 = vmatpush.bf16.msra.mxu0 0
        %842 = vmatpush.bf16.msra.mxu0 0
        %843 = vmatpush.bf16.msra.mxu0 0
        %844 = vmatpush.bf16.msra.mxu0 0
        %845 = vmatpush.bf16.msra.mxu0 0
        %846 = vmatpush.bf16.msra.mxu0 0
        %847 = vmatpush.bf16.msra.mxu0 %v825
        %848 = vmatmul.bf16.gmra.mxu0 %v819
        %v849 = vpop.f32.mrf.mxu0
        %v850 = vadd.f32 0.0, %v849
        %v851 = vpop.f32.mrf.mxu0
        %852 = vdwg.mxu0
        %v853 = vadd.f32 %v796, %v837
        %v854 = vadd.f32 %v797, %v850
        %855 = vrot.lane.b32.xlu0 %v416, 111
        %v856 = vpop.permute.xlu0 %855
        %857 = vrot.lane.b32.xlu0 %v417, 111
        %v858 = vpop.permute.xlu0 %857
        %vm859 = vcmp.lt.s32.totalorder %v423, 111
        %v860 = vsel %vm859, %v856, %v858
        %v861 = vsel %vm859, %v858, %v856
        %s862 = scalar_lea.vmem %s3, 16
        %v863 = vld [vmem:[%s862] sm:$0x3]
        %v865 = vperm.slane %v863, 0
        %v866 = vperm.slane %v863, 1
        %v869 = vmul.f32 %v860, %v865
        %v870 = vmul.f32 %v861, %v866
        %s871 = scalar_lea.vmem %s4, 32
        %v872 = vld [vmem:[%s871] sm:$0xf]
        %v873 = vpack.c.bf16 %v869, %v869
        %v874 = vpack.c.bf16 %v870, %v870
        %v876 = vsel %vm458, %v872, 0
        %v879 = vsel %vm415, %v873, 0
        %v882 = vsel %vm415, %v874, 0
        %884 = vmatpush.bf16.msra.mxu0 0
        %885 = vmatpush.bf16.msra.mxu0 0
        %886 = vmatpush.bf16.msra.mxu0 0
        %887 = vmatpush.bf16.msra.mxu0 0
        %888 = vmatpush.bf16.msra.mxu0 0
        %889 = vmatpush.bf16.msra.mxu0 0
        %890 = vmatpush.bf16.msra.mxu0 0
        %891 = vmatpush.bf16.msra.mxu0 %v879
        %892 = vmatmul.bf16.gmra.mxu0 %v876
        %v893 = vpop.f32.mrf.mxu0
        %v894 = vadd.f32 0.0, %v893
        %v895 = vpop.f32.mrf.mxu0
        %896 = vdwg.mxu0
        %897 = vmatpush.bf16.msra.mxu0 0
        %898 = vmatpush.bf16.msra.mxu0 0
        %899 = vmatpush.bf16.msra.mxu0 0
        %900 = vmatpush.bf16.msra.mxu0 0
        %901 = vmatpush.bf16.msra.mxu0 0
        %902 = vmatpush.bf16.msra.mxu0 0
        %903 = vmatpush.bf16.msra.mxu0 0
        %904 = vmatpush.bf16.msra.mxu0 %v882
        %905 = vmatmul.bf16.gmra.mxu0 %v876
        %v906 = vpop.f32.mrf.mxu0
        %v907 = vadd.f32 0.0, %v906
        %v908 = vpop.f32.mrf.mxu0
        %909 = vdwg.mxu0
        %v910 = vadd.f32 %v853, %v894
        %v911 = vadd.f32 %v854, %v907
        %v912 = vld [vmem:[%s5] sm:$0xff]
        %914 = vset.pattern.permute.xlu0 0
        %915 = vperm.xlu0 %914, %v912
        %v916 = vpop.permute.xlu0 %915
        %v918 = vadd.f32 %v910, %v916
        %v919 = vadd.f32 %v911, %v916
        %v920 = vmax.f32 %v918, 0.0
        %v921 = vmax.f32 %v919, 0.0
        %922 = vrot.lane.b32.xlu0 %v920, 17
        %v923 = vpop.permute.xlu0 %922
        %924 = vrot.lane.b32.xlu0 %v921, 17
        %v925 = vpop.permute.xlu0 %924
        %v926 = vsel %vm424, %v923, %v925
        %v927 = vsel %vm424, %v925, %v923
        %v928 = vmul.f32 %v927, %v429
        %v929 = vmul.f32 %v926, %v430
        %v930 = vld [vmem:[%s6] sm:$0xf]
        %v931 = vpack.c.bf16 %v928, %v928
        %v932 = vpack.c.bf16 %v929, %v929
        %933 = vrot.lane.b32.xlu0 %v920, 16
        %v934 = vpop.permute.xlu0 %933
        %935 = vrot.lane.b32.xlu0 %v921, 16
        %v936 = vpop.permute.xlu0 %935
        %v937 = vsel %vm442, %v934, %v936
        %v938 = vsel %vm442, %v936, %v934
        %v939 = vmul.f32 %v938, %v448
        %v940 = vmul.f32 %v937, %v449
        %s941 = scalar_lea.vmem %s6, 4
        %v942 = vld [vmem:[%s941] sm:$0xf]
        %v943 = vpack.c.bf16 %v939, %v939
        %v944 = vpack.c.bf16 %v940, %v940
        %v946 = vsel %vm458, %v942, 0
        %v949 = vsel %vm415, %v943, 0
        %v952 = vsel %vm415, %v944, 0
        %954 = vmatpush.bf16.msra.mxu0 0
        %955 = vmatpush.bf16.msra.mxu0 0
        %956 = vmatpush.bf16.msra.mxu0 0
        %957 = vmatpush.bf16.msra.mxu0 0
        %958 = vmatpush.bf16.msra.mxu0 0
        %959 = vmatpush.bf16.msra.mxu0 0
        %960 = vmatpush.bf16.msra.mxu0 0
        %961 = vmatpush.bf16.msra.mxu0 %v949
        %962 = vmatmul.bf16.gmra.mxu0 %v946
        %v963 = vpop.f32.mrf.mxu0
        %v964 = vadd.f32 0.0, %v963
        %v965 = vpop.f32.mrf.mxu0
        %966 = vdwg.mxu0
        %967 = vmatpush.bf16.msra.mxu0 0
        %968 = vmatpush.bf16.msra.mxu0 0
        %969 = vmatpush.bf16.msra.mxu0 0
        %970 = vmatpush.bf16.msra.mxu0 0
        %971 = vmatpush.bf16.msra.mxu0 0
        %972 = vmatpush.bf16.msra.mxu0 0
        %973 = vmatpush.bf16.msra.mxu0 0
        %974 = vmatpush.bf16.msra.mxu0 %v952
        %975 = vmatmul.bf16.gmra.mxu0 %v946
        %v976 = vpop.f32.mrf.mxu0
        %v977 = vadd.f32 0.0, %v976
        %v978 = vpop.f32.mrf.mxu0
        %979 = vdwg.mxu0
        %v981 = vsel %vm458, %v930, 0
        %v984 = vsel %vm415, %v931, 0
        %v987 = vsel %vm415, %v932, 0
        %989 = vmatpush.bf16.msra.mxu0 0
        %990 = vmatpush.bf16.msra.mxu0 0
        %991 = vmatpush.bf16.msra.mxu0 0
        %992 = vmatpush.bf16.msra.mxu0 0
        %993 = vmatpush.bf16.msra.mxu0 0
        %994 = vmatpush.bf16.msra.mxu0 0
        %995 = vmatpush.bf16.msra.mxu0 0
        %996 = vmatpush.bf16.msra.mxu0 %v984
        %997 = vmatmul.bf16.gmra.mxu0 %v981
        %v998 = vpop.f32.mrf.mxu0
        %v999 = vadd.f32 %v964, %v998
        %v1000 = vpop.f32.mrf.mxu0
        %1001 = vdwg.mxu0
        %1002 = vmatpush.bf16.msra.mxu0 0
        %1003 = vmatpush.bf16.msra.mxu0 0
        %1004 = vmatpush.bf16.msra.mxu0 0
        %1005 = vmatpush.bf16.msra.mxu0 0
        %1006 = vmatpush.bf16.msra.mxu0 0
        %1007 = vmatpush.bf16.msra.mxu0 0
        %1008 = vmatpush.bf16.msra.mxu0 0
        %1009 = vmatpush.bf16.msra.mxu0 %v987
        %1010 = vmatmul.bf16.gmra.mxu0 %v981
        %v1011 = vpop.f32.mrf.mxu0
        %v1012 = vadd.f32 %v977, %v1011
        %v1013 = vpop.f32.mrf.mxu0
        %1014 = vdwg.mxu0
        %1015 = vrot.lane.b32.xlu0 %v920, 15
        %v1016 = vpop.permute.xlu0 %1015
        %1017 = vrot.lane.b32.xlu0 %v921, 15
        %v1018 = vpop.permute.xlu0 %1017
        %v1019 = vsel %vm533, %v1016, %v1018
        %v1020 = vsel %vm533, %v1018, %v1016
        %v1021 = vmul.f32 %v1020, %v539
        %v1022 = vmul.f32 %v1019, %v540
        %s1023 = scalar_lea.vmem %s6, 8
        %v1024 = vld [vmem:[%s1023] sm:$0xf]
        %v1025 = vpack.c.bf16 %v1021, %v1021
        %v1026 = vpack.c.bf16 %v1022, %v1022
        %v1028 = vsel %vm458, %v1024, 0
        %v1031 = vsel %vm415, %v1025, 0
        %v1034 = vsel %vm415, %v1026, 0
        %1036 = vmatpush.bf16.msra.mxu0 0
        %1037 = vmatpush.bf16.msra.mxu0 0
        %1038 = vmatpush.bf16.msra.mxu0 0
        %1039 = vmatpush.bf16.msra.mxu0 0
        %1040 = vmatpush.bf16.msra.mxu0 0
        %1041 = vmatpush.bf16.msra.mxu0 0
        %1042 = vmatpush.bf16.msra.mxu0 0
        %1043 = vmatpush.bf16.msra.mxu0 %v1031
        %1044 = vmatmul.bf16.gmra.mxu0 %v1028
        %v1045 = vpop.f32.mrf.mxu0
        %v1046 = vadd.f32 0.0, %v1045
        %v1047 = vpop.f32.mrf.mxu0
        %1048 = vdwg.mxu0
        %1049 = vmatpush.bf16.msra.mxu0 0
        %1050 = vmatpush.bf16.msra.mxu0 0
        %1051 = vmatpush.bf16.msra.mxu0 0
        %1052 = vmatpush.bf16.msra.mxu0 0
        %1053 = vmatpush.bf16.msra.mxu0 0
        %1054 = vmatpush.bf16.msra.mxu0 0
        %1055 = vmatpush.bf16.msra.mxu0 0
        %1056 = vmatpush.bf16.msra.mxu0 %v1034
        %1057 = vmatmul.bf16.gmra.mxu0 %v1028
        %v1058 = vpop.f32.mrf.mxu0
        %v1059 = vadd.f32 0.0, %v1058
        %v1060 = vpop.f32.mrf.mxu0
        %1061 = vdwg.mxu0
        %v1062 = vadd.f32 %v999, %v1046
        %v1063 = vadd.f32 %v1012, %v1059
        %1064 = vrot.lane.b32.xlu0 %v920, 1
        %v1065 = vpop.permute.xlu0 %1064
        %1066 = vrot.lane.b32.xlu0 %v921, 1
        %v1067 = vpop.permute.xlu0 %1066
        %v1068 = vsel %vm590, %v1065, %v1067
        %v1069 = vsel %vm590, %v1067, %v1065
        %v1070 = vmul.f32 %v1069, %v596
        %v1071 = vmul.f32 %v1068, %v597
        %s1072 = scalar_lea.vmem %s6, 12
        %v1073 = vld [vmem:[%s1072] sm:$0xf]
        %v1074 = vpack.c.bf16 %v1070, %v1070
        %v1075 = vpack.c.bf16 %v1071, %v1071
        %v1077 = vsel %vm458, %v1073, 0
        %v1080 = vsel %vm415, %v1074, 0
        %v1083 = vsel %vm415, %v1075, 0
        %1085 = vmatpush.bf16.msra.mxu0 0
        %1086 = vmatpush.bf16.msra.mxu0 0
        %1087 = vmatpush.bf16.msra.mxu0 0
        %1088 = vmatpush.bf16.msra.mxu0 0
        %1089 = vmatpush.bf16.msra.mxu0 0
        %1090 = vmatpush.bf16.msra.mxu0 0
        %1091 = vmatpush.bf16.msra.mxu0 0
        %1092 = vmatpush.bf16.msra.mxu0 %v1080
        %1093 = vmatmul.bf16.gmra.mxu0 %v1077
        %v1094 = vpop.f32.mrf.mxu0
        %v1095 = vadd.f32 0.0, %v1094
        %v1096 = vpop.f32.mrf.mxu0
        %1097 = vdwg.mxu0
        %1098 = vmatpush.bf16.msra.mxu0 0
        %1099 = vmatpush.bf16.msra.mxu0 0
        %1100 = vmatpush.bf16.msra.mxu0 0
        %1101 = vmatpush.bf16.msra.mxu0 0
        %1102 = vmatpush.bf16.msra.mxu0 0
        %1103 = vmatpush.bf16.msra.mxu0 0
        %1104 = vmatpush.bf16.msra.mxu0 0
        %1105 = vmatpush.bf16.msra.mxu0 %v1083
        %1106 = vmatmul.bf16.gmra.mxu0 %v1077
        %v1107 = vpop.f32.mrf.mxu0
        %v1108 = vadd.f32 0.0, %v1107
        %v1109 = vpop.f32.mrf.mxu0
        %1110 = vdwg.mxu0
        %v1111 = vadd.f32 %v1062, %v1095
        %v1112 = vadd.f32 %v1063, %v1108
        %s1113 = scalar_lea.vmem %s6, 16
        %v1114 = vld [vmem:[%s1113] sm:$0xf]
        %v1115 = vpack.c.bf16 %v920, %v920
        %v1116 = vpack.c.bf16 %v921, %v921
        %v1118 = vsel %vm458, %v1114, 0
        %v1121 = vsel %vm415, %v1115, 0
        %v1124 = vsel %vm415, %v1116, 0
        %1126 = vmatpush.bf16.msra.mxu0 0
        %1127 = vmatpush.bf16.msra.mxu0 0
        %1128 = vmatpush.bf16.msra.mxu0 0
        %1129 = vmatpush.bf16.msra.mxu0 0
        %1130 = vmatpush.bf16.msra.mxu0 0
        %1131 = vmatpush.bf16.msra.mxu0 0
        %1132 = vmatpush.bf16.msra.mxu0 0
        %1133 = vmatpush.bf16.msra.mxu0 %v1121
        %1134 = vmatmul.bf16.gmra.mxu0 %v1118
        %v1135 = vpop.f32.mrf.mxu0
        %v1136 = vadd.f32 0.0, %v1135
        %v1137 = vpop.f32.mrf.mxu0
        %1138 = vdwg.mxu0
        %1139 = vmatpush.bf16.msra.mxu0 0
        %1140 = vmatpush.bf16.msra.mxu0 0
        %1141 = vmatpush.bf16.msra.mxu0 0
        %1142 = vmatpush.bf16.msra.mxu0 0
        %1143 = vmatpush.bf16.msra.mxu0 0
        %1144 = vmatpush.bf16.msra.mxu0 0
        %1145 = vmatpush.bf16.msra.mxu0 0
        %1146 = vmatpush.bf16.msra.mxu0 %v1124
        %1147 = vmatmul.bf16.gmra.mxu0 %v1118
        %v1148 = vpop.f32.mrf.mxu0
        %v1149 = vadd.f32 0.0, %v1148
        %v1150 = vpop.f32.mrf.mxu0
        %1151 = vdwg.mxu0
        %v1152 = vadd.f32 %v1111, %v1136
        %v1153 = vadd.f32 %v1112, %v1149
        %1154 = vrot.lane.b32.xlu0 %v920, 127
        %v1155 = vpop.permute.xlu0 %1154
        %1156 = vrot.lane.b32.xlu0 %v921, 127
        %v1157 = vpop.permute.xlu0 %1156
        %v1158 = vsel %vm688, %v1155, %v1157
        %v1159 = vsel %vm688, %v1157, %v1155
        %v1160 = vmul.f32 %v1158, %v694
        %v1161 = vmul.f32 %v1159, %v695
        %s1162 = scalar_lea.vmem %s6, 20
        %v1163 = vld [vmem:[%s1162] sm:$0xf]
        %v1164 = vpack.c.bf16 %v1160, %v1160
        %v1165 = vpack.c.bf16 %v1161, %v1161
        %v1167 = vsel %vm458, %v1163, 0
        %v1170 = vsel %vm415, %v1164, 0
        %v1173 = vsel %vm415, %v1165, 0
        %1175 = vmatpush.bf16.msra.mxu0 0
        %1176 = vmatpush.bf16.msra.mxu0 0
        %1177 = vmatpush.bf16.msra.mxu0 0
        %1178 = vmatpush.bf16.msra.mxu0 0
        %1179 = vmatpush.bf16.msra.mxu0 0
        %1180 = vmatpush.bf16.msra.mxu0 0
        %1181 = vmatpush.bf16.msra.mxu0 0
        %1182 = vmatpush.bf16.msra.mxu0 %v1170
        %1183 = vmatmul.bf16.gmra.mxu0 %v1167
        %v1184 = vpop.f32.mrf.mxu0
        %v1185 = vadd.f32 0.0, %v1184
        %v1186 = vpop.f32.mrf.mxu0
        %1187 = vdwg.mxu0
        %1188 = vmatpush.bf16.msra.mxu0 0
        %1189 = vmatpush.bf16.msra.mxu0 0
        %1190 = vmatpush.bf16.msra.mxu0 0
        %1191 = vmatpush.bf16.msra.mxu0 0
        %1192 = vmatpush.bf16.msra.mxu0 0
        %1193 = vmatpush.bf16.msra.mxu0 0
        %1194 = vmatpush.bf16.msra.mxu0 0
        %1195 = vmatpush.bf16.msra.mxu0 %v1173
        %1196 = vmatmul.bf16.gmra.mxu0 %v1167
        %v1197 = vpop.f32.mrf.mxu0
        %v1198 = vadd.f32 0.0, %v1197
        %v1199 = vpop.f32.mrf.mxu0
        %1200 = vdwg.mxu0
        %v1201 = vadd.f32 %v1152, %v1185
        %v1202 = vadd.f32 %v1153, %v1198
        %1203 = vrot.lane.b32.xlu0 %v920, 113
        %v1204 = vpop.permute.xlu0 %1203
        %1205 = vrot.lane.b32.xlu0 %v921, 113
        %v1206 = vpop.permute.xlu0 %1205
        %v1207 = vsel %vm745, %v1204, %v1206
        %v1208 = vsel %vm745, %v1206, %v1204
        %v1209 = vmul.f32 %v1207, %v751
        %v1210 = vmul.f32 %v1208, %v752
        %s1211 = scalar_lea.vmem %s6, 24
        %v1212 = vld [vmem:[%s1211] sm:$0xf]
        %v1213 = vpack.c.bf16 %v1209, %v1209
        %v1214 = vpack.c.bf16 %v1210, %v1210
        %v1216 = vsel %vm458, %v1212, 0
        %v1219 = vsel %vm415, %v1213, 0
        %v1222 = vsel %vm415, %v1214, 0
        %1224 = vmatpush.bf16.msra.mxu0 0
        %1225 = vmatpush.bf16.msra.mxu0 0
        %1226 = vmatpush.bf16.msra.mxu0 0
        %1227 = vmatpush.bf16.msra.mxu0 0
        %1228 = vmatpush.bf16.msra.mxu0 0
        %1229 = vmatpush.bf16.msra.mxu0 0
        %1230 = vmatpush.bf16.msra.mxu0 0
        %1231 = vmatpush.bf16.msra.mxu0 %v1219
        %1232 = vmatmul.bf16.gmra.mxu0 %v1216
        %v1233 = vpop.f32.mrf.mxu0
        %v1234 = vadd.f32 0.0, %v1233
        %v1235 = vpop.f32.mrf.mxu0
        %1236 = vdwg.mxu0
        %1237 = vmatpush.bf16.msra.mxu0 0
        %1238 = vmatpush.bf16.msra.mxu0 0
        %1239 = vmatpush.bf16.msra.mxu0 0
        %1240 = vmatpush.bf16.msra.mxu0 0
        %1241 = vmatpush.bf16.msra.mxu0 0
        %1242 = vmatpush.bf16.msra.mxu0 0
        %1243 = vmatpush.bf16.msra.mxu0 0
        %1244 = vmatpush.bf16.msra.mxu0 %v1222
        %1245 = vmatmul.bf16.gmra.mxu0 %v1216
        %v1246 = vpop.f32.mrf.mxu0
        %v1247 = vadd.f32 0.0, %v1246
        %v1248 = vpop.f32.mrf.mxu0
        %1249 = vdwg.mxu0
        %v1250 = vadd.f32 %v1201, %v1234
        %v1251 = vadd.f32 %v1202, %v1247
        %1252 = vrot.lane.b32.xlu0 %v920, 112
        %v1253 = vpop.permute.xlu0 %1252
        %1254 = vrot.lane.b32.xlu0 %v921, 112
        %v1255 = vpop.permute.xlu0 %1254
        %v1256 = vsel %vm802, %v1253, %v1255
        %v1257 = vsel %vm802, %v1255, %v1253
        %v1258 = vmul.f32 %v1256, %v808
        %v1259 = vmul.f32 %v1257, %v809
        %s1260 = scalar_lea.vmem %s6, 28
        %v1261 = vld [vmem:[%s1260] sm:$0xf]
        %v1262 = vpack.c.bf16 %v1258, %v1258
        %v1263 = vpack.c.bf16 %v1259, %v1259
        %v1265 = vsel %vm458, %v1261, 0
        %v1268 = vsel %vm415, %v1262, 0
        %v1271 = vsel %vm415, %v1263, 0
        %1273 = vmatpush.bf16.msra.mxu0 0
        %1274 = vmatpush.bf16.msra.mxu0 0
        %1275 = vmatpush.bf16.msra.mxu0 0
        %1276 = vmatpush.bf16.msra.mxu0 0
        %1277 = vmatpush.bf16.msra.mxu0 0
        %1278 = vmatpush.bf16.msra.mxu0 0
        %1279 = vmatpush.bf16.msra.mxu0 0
        %1280 = vmatpush.bf16.msra.mxu0 %v1268
        %1281 = vmatmul.bf16.gmra.mxu0 %v1265
        %v1282 = vpop.f32.mrf.mxu0
        %v1283 = vadd.f32 0.0, %v1282
        %v1284 = vpop.f32.mrf.mxu0
        %1285 = vdwg.mxu0
        %1286 = vmatpush.bf16.msra.mxu0 0
        %1287 = vmatpush.bf16.msra.mxu0 0
        %1288 = vmatpush.bf16.msra.mxu0 0
        %1289 = vmatpush.bf16.msra.mxu0 0
        %1290 = vmatpush.bf16.msra.mxu0 0
        %1291 = vmatpush.bf16.msra.mxu0 0
        %1292 = vmatpush.bf16.msra.mxu0 0
        %1293 = vmatpush.bf16.msra.mxu0 %v1271
        %1294 = vmatmul.bf16.gmra.mxu0 %v1265
        %v1295 = vpop.f32.mrf.mxu0
        %v1296 = vadd.f32 0.0, %v1295
        %v1297 = vpop.f32.mrf.mxu0
        %1298 = vdwg.mxu0
        %v1299 = vadd.f32 %v1250, %v1283
        %v1300 = vadd.f32 %v1251, %v1296
        %1301 = vrot.lane.b32.xlu0 %v920, 111
        %v1302 = vpop.permute.xlu0 %1301
        %1303 = vrot.lane.b32.xlu0 %v921, 111
        %v1304 = vpop.permute.xlu0 %1303
        %v1305 = vsel %vm859, %v1302, %v1304
        %v1306 = vsel %vm859, %v1304, %v1302
        %v1307 = vmul.f32 %v1305, %v865
        %v1308 = vmul.f32 %v1306, %v866
        %s1309 = scalar_lea.vmem %s6, 32
        %v1310 = vld [vmem:[%s1309] sm:$0xf]
        %v1311 = vpack.c.bf16 %v1307, %v1307
        %v1312 = vpack.c.bf16 %v1308, %v1308
        %v1314 = vsel %vm458, %v1310, 0
        %v1317 = vsel %vm415, %v1311, 0
        %v1320 = vsel %vm415, %v1312, 0
        %1322 = vmatpush.bf16.msra.mxu0 0
        %1323 = vmatpush.bf16.msra.mxu0 0
        %1324 = vmatpush.bf16.msra.mxu0 0
        %1325 = vmatpush.bf16.msra.mxu0 0
        %1326 = vmatpush.bf16.msra.mxu0 0
        %1327 = vmatpush.bf16.msra.mxu0 0
        %1328 = vmatpush.bf16.msra.mxu0 0
        %1329 = vmatpush.bf16.msra.mxu0 %v1317
        %1330 = vmatmul.bf16.gmra.mxu0 %v1314
        %v1331 = vpop.f32.mrf.mxu0
        %v1332 = vadd.f32 0.0, %v1331
        %v1333 = vpop.f32.mrf.mxu0
        %1334 = vdwg.mxu0
        %1335 = vmatpush.bf16.msra.mxu0 0
        %1336 = vmatpush.bf16.msra.mxu0 0
        %1337 = vmatpush.bf16.msra.mxu0 0
        %1338 = vmatpush.bf16.msra.mxu0 0
        %1339 = vmatpush.bf16.msra.mxu0 0
        %1340 = vmatpush.bf16.msra.mxu0 0
        %1341 = vmatpush.bf16.msra.mxu0 0
        %1342 = vmatpush.bf16.msra.mxu0 %v1320
        %1343 = vmatmul.bf16.gmra.mxu0 %v1314
        %v1344 = vpop.f32.mrf.mxu0
        %v1345 = vadd.f32 0.0, %v1344
        %v1346 = vpop.f32.mrf.mxu0
        %1347 = vdwg.mxu0
        %v1348 = vadd.f32 %v1299, %v1332
        %v1349 = vadd.f32 %v1300, %v1345
        %v1350 = vld [vmem:[%s7] sm:$0xff]
        %1352 = vset.pattern.permute.xlu0 0
        %1353 = vperm.xlu0 %1352, %v1350
        %v1354 = vpop.permute.xlu0 %1353
        %v1356 = vadd.f32 %v1348, %v1354
        %v1357 = vadd.f32 %v1349, %v1354
        %v1358 = vmax.f32 %v1356, 0.0
        %v1359 = vmax.f32 %v1357, 0.0
        %1360 = vst [vmem:[%s311] sm:$0xff] %v1358
        %1361 = vst [vmem:[%s311 + $0x8] sm:$0xff] %v1359
        %s1362 = sand.u32 %s208, 1
        %s1363 = scalar_lea.sflag [#allocation3], %s1362
        %s1364 = sand.u32 %s208, 1
        %s1365 = smul.addr %s1364, 16
        %s1366 = scalar_lea.vmem [#allocation2], %s1365
        // Predicated region
        $region53: #{tpu_custom_call.1} parent=51 // pred_check
          %p1367 = pneg %p218
        $region54: #{tpu_custom_call.1} parent=51 // pred_check_branch
          %1369 = sbr.rel (%p1367) target = $region56
        $region55: #{tpu_custom_call.1} parent=51 // pred_region
          %1371 = vsyncadd %s1363, 0
          %s1372 = smul.addr %s22, 2
          %s1373 = smul.addr %s1372, 8
          %s1374 = scalar_lea.hbm %s8, %s1373
          %s1376 = sshll.u32 %s1366, 4
          %s1377 = int_to_ptr.vmem [resolvable:$true] %s1376
          %s1378 = sshll.u32 %s1374, 4
          %s1379 = int_to_ptr.hbm [resolvable:$true] %s1378
          %1381 = dma.vmem_to_hbm [thread:$0]  %s1377, 256, %s1379, %s1363
        $region56: #{tpu_custom_call.1} parent=51 // pred_fallthru
          _
      $region52: #{tpu_custom_call.1} parent=5 // pred_fallthru
        _
      %p1382 = scmp.le.s32.totalorder 2, %s17
      // Predicated region
      $region57: #{tpu_custom_call.1} parent=5 // pred_check
        %p1383 = pneg %p1382
      $region58: #{tpu_custom_call.1} parent=5 // pred_check_branch
        %1385 = sbr.rel (%p1383) target = $region60
      $region59: #{tpu_custom_call.1} parent=5 // pred_region
        %s1386 = ssub.s32 %s17, 2
        // Predicated region
        $region61: #{tpu_custom_call.1} parent=59 // pred_check
          %p1387 = pneg %p224
        $region62: #{tpu_custom_call.1} parent=59 // pred_check_branch
          %1389 = sbr.rel (%p1387) target = $region64
        $region63: #{tpu_custom_call.1} parent=59 // pred_region
          %s1390 = sand.u32 %s209, 1
          %s1391 = scalar_lea.sflag [#allocation3], %s1390
          %s1392 = sand.u32 %s209, 1
          %s1393 = smul.addr %s1392, 16
          %s1394 = scalar_lea.vmem [#allocation2], %s1393
          %1396 = dma.done %s1391, 256
        $region64: #{tpu_custom_call.1} parent=59 // pred_fallthru
          _
      $region60: #{tpu_custom_call.1} parent=5 // pred_fallthru
        _
    $region6: #{tpu_custom_call.1} parent=1 // loop_footer
      %s21 = sadd.s32 1, %s17
    $region7: #{tpu_custom_call.1} parent=1 // loop_footer_branch
      %16 = sbr.rel target = $region3
    $region8: #{tpu_custom_call.1} parent=1 // loop_exit
      _
    %1397 = vsyncpa [#allocation3], 1
    %s1398 = scalar_lea.sflag [#allocation3], 1
    %1399 = vsyncpa %s1398, 1

</llo_original>
